<compile_context>
chip_gen: v6e
topology: v6e:2x2x1
jax: 0.10.0
libtpu: 0.0.40
codegen_flags: <defaults>
</compile_context>

<pallas_src>
import jax
import jax.numpy as jnp
from jax.experimental import pallas as pl
from jax.experimental.pallas import tpu as pltpu


def _make_encoder_kernel(num_layers, T, Bp, H):
    """Single-invocation kernel for a `num_layers`-deep LSTM stack.

    Positional refs:
      inputs : x_tm  (T*Bp, Ipad)  time-major, batch- and feature-padded input
               [wihT_l (in_l, 4H), whhT_l (H, 4H), b_l (1, 4H)]  for l = 0..L-1
      outputs: h_out (L, Bp, H), c_out (L, Bp, H)
      scratch: seq_sc (T*Bp, H)  hidden sequence handed to the next layer (VMEM only)
    """
    n_in = 1 + 3 * num_layers

    def kernel(*refs):
        x_ref = refs[0]
        wrefs = refs[1:n_in]
        h_out, c_out = refs[n_in], refs[n_in + 1]
        seq_sc = refs[n_in + 2]

        # Lane mask selecting the "g" gate (PyTorch gate order [i, f, g, o]).
        # Hoisted out of the time loop (broadcasts are not CSE'd by JAX).
        lane = jax.lax.broadcasted_iota(jnp.int32, (Bp, 4 * H), 1)
        g_mask = jnp.logical_and(lane >= 2 * H, lane < 3 * H)
        half = jnp.float32(0.5)

        def run_layer(gx_all, whhT, layer_idx):
            h = jnp.zeros((Bp, H), jnp.float32)
            c = jnp.zeros((Bp, H), jnp.float32)
            keep_seq = layer_idx < num_layers - 1
            # Static unroll (T=8, H=32): full cross-step scheduler visibility,
            # negligible vreg pressure at these shapes.
            for t in range(T):
                # Only the h @ W_hh^T matmul remains on the serial critical path;
                # the gx slice is a whole sublane-aligned (8, 4H) slab.
                gates = gx_all[t * Bp:(t + 1) * Bp, :] + jnp.dot(
                    h, whhT, preferred_element_type=jnp.float32)
                # Single tanh pass over all 4H lanes:
                #   g lanes: tanh(x); other lanes: sigmoid(x) = 0.5*(tanh(x/2)+1).
                pre = jnp.where(g_mask, gates, half * gates)
                y = jnp.tanh(pre)
                act = jnp.where(g_mask, y, half * y + half)
                i_g = act[:, 0:H]
                f_g = act[:, H:2 * H]
                g_g = act[:, 2 * H:3 * H]
                o_g = act[:, 3 * H:4 * H]
                c = f_g * c + i_g * g_g
                h = o_g * jnp.tanh(c)
                if keep_seq:
                    seq_sc[t * Bp:(t + 1) * Bp, :] = h  # VMEM-only, sublane-aligned
            h_out[layer_idx] = h
            c_out[layer_idx] = c

        # Each layer: hoist the input projection over all T steps into one big matmul,
        # then run the serial recurrence.
        inp = x_ref[...]
        for l in range(num_layers):
            wihT = wrefs[3 * l + 0][...]
            whhT = wrefs[3 * l + 1][...]
            bias = wrefs[3 * l + 2][...]
            gx = jnp.dot(inp, wihT, preferred_element_type=jnp.float32) + bias
            run_layer(gx, whhT, l)
            if l < num_layers - 1:
                inp = seq_sc[...]

    return kernel


def prepare_params(params):
    """One-time preprocessing: transpose weights, pad input dim to a multiple of 8,
    fold the two biases."""
    prepared = []
    for (w_ih, w_hh, b_ih, b_hh) in params:
        in_dim = w_ih.shape[1]
        ipad = ((in_dim + 7) // 8) * 8
        wihT = jnp.transpose(w_ih)                      # (in_dim, 4H)
        if ipad != in_dim:
            wihT = jnp.pad(wihT, ((0, ipad - in_dim), (0, 0)))
        prepared.append((wihT,                          # (ipad, 4H)
                         jnp.transpose(w_hh),           # (H, 4H)
                         (b_ih + b_hh).reshape(1, -1))) # (1, 4H)
    return prepared


@jax.jit
def encoder_forward(x, prepared):
    """Mirror of Encoder.forward: x (B, T, I) -> (hidden, cell), each (L, B, H)."""
    B, T, I = x.shape
    L = len(prepared)
    H = prepared[0][1].shape[0]
    Ipad = prepared[0][0].shape[0]
    Bp = 8  # pad batch to one full sublane group

    # Time-major layout with batch padded to Bp and features zero-padded to Ipad.
    x_tm = jnp.transpose(x, (1, 0, 2))                          # (T, B, I)
    x_tm = jnp.pad(x_tm, ((0, 0), (0, Bp - B), (0, Ipad - I)))  # (T, Bp, Ipad)
    x_tm = x_tm.reshape(T * Bp, Ipad)

    inputs = [x_tm]
    for (wihT, whhT, b) in prepared:
        inputs.extend([wihT, whhT, b])

    def vmem():
        return pl.BlockSpec(memory_space=pltpu.MemorySpace.VMEM)

    hidden_p, cell_p = pl.pallas_call(
        _make_encoder_kernel(L, T, Bp, H),
        out_shape=(jax.ShapeDtypeStruct((L, Bp, H), jnp.float32),
                   jax.ShapeDtypeStruct((L, Bp, H), jnp.float32)),
        in_specs=[vmem() for _ in inputs],
        out_specs=(vmem(), vmem()),
        scratch_shapes=[pltpu.VMEM((T * Bp, H), jnp.float32)],
    )(*inputs)
    # Strip batch padding.
    return hidden_p[:, :B, :], cell_p[:, :B, :]


def encoder_reference(x, params):
    """Pure-JAX lax.scan reference for correctness checking."""
    x_tm = jnp.transpose(x, (1, 0, 2))
    h_list, c_list = [], []
    inp = x_tm
    for (w_ih, w_hh, b_ih, b_hh) in params:
        T, B, _ = inp.shape
        H = w_hh.shape[1]

        def step(carry, x_t):
            h, c = carry
            gates = x_t @ w_ih.T + b_ih + h @ w_hh.T + b_hh
            i, f, g, o = jnp.split(gates, 4, axis=-1)
            i = jax.nn.sigmoid(i)
            f = jax.nn.sigmoid(f)
            g = jnp.tanh(g)
            o = jax.nn.sigmoid(o)
            c = f * c + i * g
            h = o * jnp.tanh(c)
            return (h, c), h

        (hN, cN), out = jax.lax.scan(
            step, (jnp.zeros((B, H), jnp.float32),
                   jnp.zeros((B, H), jnp.float32)), inp)
        inp = out
        h_list.append(hN)
        c_list.append(cN)
    return jnp.stack(h_list, axis=0), jnp.stack(c_list, axis=0)


if __name__ == "__main__":
    # Shapes implied by the module globals: inputSize=41, hiddenSize=32, layers=2.
    B, T, I, H, L = 2, 8, 41, 32, 2

    key = jax.random.PRNGKey(0)
    keys = jax.random.split(key, 1 + 4 * L)
    x = jax.random.normal(keys[0], (B, T, I), dtype=jnp.float32)

    # Deterministic parameter init, matching nn.LSTM's U(-1/sqrt(H), 1/sqrt(H)).
    bound = 1.0 / (H ** 0.5)
    params = []
    ki = 1
    for layer in range(L):
        in_dim = I if layer == 0 else H
        w_ih = jax.random.uniform(keys[ki + 0], (4 * H, in_dim), jnp.float32,
                                  -bound, bound)
        w_hh = jax.random.uniform(keys[ki + 1], (4 * H, H), jnp.float32,
                                  -bound, bound)
        b_ih = jax.random.uniform(keys[ki + 2], (4 * H,), jnp.float32,
                                  -bound, bound)
        b_hh = jax.random.uniform(keys[ki + 3], (4 * H,), jnp.float32,
                                  -bound, bound)
        params.append((w_ih, w_hh, b_ih, b_hh))
        ki += 4

    prepared = prepare_params(params)
    hidden, cell = encoder_forward(x, prepared)
    jax.block_until_ready((hidden, cell))

    h_ref, c_ref = encoder_reference(x, params)
    assert hidden.shape == (L, B, H) and cell.shape == (L, B, H)
    assert jnp.allclose(hidden, h_ref, atol=1e-4, rtol=1e-4)
    assert jnp.allclose(cell, c_ref, atol=1e-4, rtol=1e-4)

    print("KERNEL_OK")
</pallas_src>

<mosaic_0001>
module attributes {stable_mosaic.version = 11 : i64} {
  func.func @kernel(%arg0: memref<64x48xf32, #tpu.memory_space<vmem>>, %arg1: memref<48x128xf32, #tpu.memory_space<vmem>>, %arg2: memref<32x128xf32, #tpu.memory_space<vmem>>, %arg3: memref<1x128xf32, #tpu.memory_space<vmem>>, %arg4: memref<32x128xf32, #tpu.memory_space<vmem>>, %arg5: memref<32x128xf32, #tpu.memory_space<vmem>>, %arg6: memref<1x128xf32, #tpu.memory_space<vmem>>, %arg7: memref<2x8x32xf32, #tpu.memory_space<vmem>>, %arg8: memref<2x8x32xf32, #tpu.memory_space<vmem>>, %arg9: memref<64x32xf32, #tpu.memory_space<vmem>>) attributes {dimension_semantics = [], scalar_prefetch = 0 : i64, scratch_operands = 1 : i64, tpu.core_type = #tpu.core_type<tc>} {
    %0 = tpu.iota {dimensions = array<i32: 1>} : vector<8x128xi32>
    %c64_i32 = arith.constant 64 : i32
    %1 = vector.broadcast %c64_i32 : i32 to vector<8x128xi32>
    %2 = arith.cmpi sge, %0, %1 : vector<8x128xi32>
    %c96_i32 = arith.constant 96 : i32
    %3 = vector.broadcast %c96_i32 : i32 to vector<8x128xi32>
    %4 = arith.cmpi slt, %0, %3 : vector<8x128xi32>
    %5 = arith.andi %2, %4 : vector<8x128xi1>
    %c0 = arith.constant 0 : index
    %c0_0 = arith.constant 0 : index
    %6 = vector.load %arg0[%c0, %c0_0] : memref<64x48xf32, #tpu.memory_space<vmem>>, vector<64x48xf32>
    %c0_1 = arith.constant 0 : index
    %c0_2 = arith.constant 0 : index
    %7 = vector.load %arg1[%c0_1, %c0_2] : memref<48x128xf32, #tpu.memory_space<vmem>>, vector<48x128xf32>
    %c0_3 = arith.constant 0 : index
    %c0_4 = arith.constant 0 : index
    %8 = vector.load %arg2[%c0_3, %c0_4] : memref<32x128xf32, #tpu.memory_space<vmem>>, vector<32x128xf32>
    %c0_5 = arith.constant 0 : index
    %c0_6 = arith.constant 0 : index
    %9 = vector.load %arg3[%c0_5, %c0_6] : memref<1x128xf32, #tpu.memory_space<vmem>>, vector<1x128xf32>
    %cst = arith.constant dense<0.000000e+00> : vector<64x128xf32>
    %10 = tpu.matmul %6, %7, %cst {dimension_numbers = #tpu.dot_dimension_numbers<[1], [0], [0], [1], [0, 0, 1, 1], [], []>} : vector<64x48xf32>, vector<48x128xf32>, vector<64x128xf32> -> vector<64x128xf32>
    %11 = vector.broadcast %9 : vector<1x128xf32> to vector<64x128xf32>
    %12 = arith.addf %10, %11 : vector<64x128xf32>
    %cst_7 = arith.constant 0.000000e+00 : f32
    %13 = vector.broadcast %cst_7 : f32 to vector<8x32xf32>
    %cst_8 = arith.constant 0.000000e+00 : f32
    %14 = vector.broadcast %cst_8 : f32 to vector<8x32xf32>
    %15 = vector.extract_strided_slice %12 {offsets = [0, 0], sizes = [8, 128], strides = [1, 1]} : vector<64x128xf32> to vector<8x128xf32>
    %cst_9 = arith.constant dense<0.000000e+00> : vector<8x128xf32>
    %16 = tpu.matmul %13, %8, %cst_9 {dimension_numbers = #tpu.dot_dimension_numbers<[1], [0], [0], [1], [0, 0, 1, 1], [], []>} : vector<8x32xf32>, vector<32x128xf32>, vector<8x128xf32> -> vector<8x128xf32>
    %17 = arith.addf %15, %16 : vector<8x128xf32>
    %cst_10 = arith.constant 5.000000e-01 : f32
    %18 = vector.broadcast %cst_10 : f32 to vector<8x128xf32>
    %19 = arith.mulf %18, %17 : vector<8x128xf32>
    %20 = arith.select %5, %17, %19 : vector<8x128xi1>, vector<8x128xf32>
    %21 = math.tanh %20 : vector<8x128xf32>
    %cst_11 = arith.constant 5.000000e-01 : f32
    %22 = vector.broadcast %cst_11 : f32 to vector<8x128xf32>
    %23 = arith.mulf %22, %21 : vector<8x128xf32>
    %cst_12 = arith.constant 5.000000e-01 : f32
    %24 = vector.broadcast %cst_12 : f32 to vector<8x128xf32>
    %25 = arith.addf %23, %24 : vector<8x128xf32>
    %26 = arith.select %5, %21, %25 : vector<8x128xi1>, vector<8x128xf32>
    %27 = vector.extract_strided_slice %26 {offsets = [0, 0], sizes = [8, 32], strides = [1, 1]} : vector<8x128xf32> to vector<8x32xf32>
    %28 = vector.extract_strided_slice %26 {offsets = [0, 32], sizes = [8, 32], strides = [1, 1]} : vector<8x128xf32> to vector<8x32xf32>
    %29 = vector.extract_strided_slice %26 {offsets = [0, 64], sizes = [8, 32], strides = [1, 1]} : vector<8x128xf32> to vector<8x32xf32>
    %30 = vector.extract_strided_slice %26 {offsets = [0, 96], sizes = [8, 32], strides = [1, 1]} : vector<8x128xf32> to vector<8x32xf32>
    %31 = arith.mulf %28, %14 : vector<8x32xf32>
    %32 = arith.mulf %27, %29 : vector<8x32xf32>
    %33 = arith.addf %31, %32 : vector<8x32xf32>
    %34 = math.tanh %33 : vector<8x32xf32>
    %35 = arith.mulf %30, %34 : vector<8x32xf32>
    %c0_13 = arith.constant 0 : index
    %c0_14 = arith.constant 0 : index
    %36 = vector.load %arg9[%c0_13, %c0_14] : memref<64x32xf32, #tpu.memory_space<vmem>>, vector<8x32xf32>
    tpu.vector_store %arg9[%c0_13, %c0_14], %35 {strides = array<i32>} : memref<64x32xf32, #tpu.memory_space<vmem>>, vector<8x32xf32>,
    %37 = vector.extract_strided_slice %12 {offsets = [8, 0], sizes = [8, 128], strides = [1, 1]} : vector<64x128xf32> to vector<8x128xf32>
    %cst_15 = arith.constant dense<0.000000e+00> : vector<8x128xf32>
    %38 = tpu.matmul %35, %8, %cst_15 {dimension_numbers = #tpu.dot_dimension_numbers<[1], [0], [0], [1], [0, 0, 1, 1], [], []>} : vector<8x32xf32>, vector<32x128xf32>, vector<8x128xf32> -> vector<8x128xf32>
    %39 = arith.addf %37, %38 : vector<8x128xf32>
    %cst_16 = arith.constant 5.000000e-01 : f32
    %40 = vector.broadcast %cst_16 : f32 to vector<8x128xf32>
    %41 = arith.mulf %40, %39 : vector<8x128xf32>
    %42 = arith.select %5, %39, %41 : vector<8x128xi1>, vector<8x128xf32>
    %43 = math.tanh %42 : vector<8x128xf32>
    %cst_17 = arith.constant 5.000000e-01 : f32
    %44 = vector.broadcast %cst_17 : f32 to vector<8x128xf32>
    %45 = arith.mulf %44, %43 : vector<8x128xf32>
    %cst_18 = arith.constant 5.000000e-01 : f32
    %46 = vector.broadcast %cst_18 : f32 to vector<8x128xf32>
    %47 = arith.addf %45, %46 : vector<8x128xf32>
    %48 = arith.select %5, %43, %47 : vector<8x128xi1>, vector<8x128xf32>
    %49 = vector.extract_strided_slice %48 {offsets = [0, 0], sizes = [8, 32], strides = [1, 1]} : vector<8x128xf32> to vector<8x32xf32>
    %50 = vector.extract_strided_slice %48 {offsets = [0, 32], sizes = [8, 32], strides = [1, 1]} : vector<8x128xf32> to vector<8x32xf32>
    %51 = vector.extract_strided_slice %48 {offsets = [0, 64], sizes = [8, 32], strides = [1, 1]} : vector<8x128xf32> to vector<8x32xf32>
    %52 = vector.extract_strided_slice %48 {offsets = [0, 96], sizes = [8, 32], strides = [1, 1]} : vector<8x128xf32> to vector<8x32xf32>
    %53 = arith.mulf %50, %33 : vector<8x32xf32>
    %54 = arith.mulf %49, %51 : vector<8x32xf32>
    %55 = arith.addf %53, %54 : vector<8x32xf32>
    %56 = math.tanh %55 : vector<8x32xf32>
    %57 = arith.mulf %52, %56 : vector<8x32xf32>
    %c8 = arith.constant 8 : index
    %c0_19 = arith.constant 0 : index
    %58 = vector.load %arg9[%c8, %c0_19] : memref<64x32xf32, #tpu.memory_space<vmem>>, vector<8x32xf32>
    tpu.vector_store %arg9[%c8, %c0_19], %57 {strides = array<i32>} : memref<64x32xf32, #tpu.memory_space<vmem>>, vector<8x32xf32>,
    %59 = vector.extract_strided_slice %12 {offsets = [16, 0], sizes = [8, 128], strides = [1, 1]} : vector<64x128xf32> to vector<8x128xf32>
    %cst_20 = arith.constant dense<0.000000e+00> : vector<8x128xf32>
    %60 = tpu.matmul %57, %8, %cst_20 {dimension_numbers = #tpu.dot_dimension_numbers<[1], [0], [0], [1], [0, 0, 1, 1], [], []>} : vector<8x32xf32>, vector<32x128xf32>, vector<8x128xf32> -> vector<8x128xf32>
    %61 = arith.addf %59, %60 : vector<8x128xf32>
    %cst_21 = arith.constant 5.000000e-01 : f32
    %62 = vector.broadcast %cst_21 : f32 to vector<8x128xf32>
    %63 = arith.mulf %62, %61 : vector<8x128xf32>
    %64 = arith.select %5, %61, %63 : vector<8x128xi1>, vector<8x128xf32>
    %65 = math.tanh %64 : vector<8x128xf32>
    %cst_22 = arith.constant 5.000000e-01 : f32
    %66 = vector.broadcast %cst_22 : f32 to vector<8x128xf32>
    %67 = arith.mulf %66, %65 : vector<8x128xf32>
    %cst_23 = arith.constant 5.000000e-01 : f32
    %68 = vector.broadcast %cst_23 : f32 to vector<8x128xf32>
    %69 = arith.addf %67, %68 : vector<8x128xf32>
    %70 = arith.select %5, %65, %69 : vector<8x128xi1>, vector<8x128xf32>
    %71 = vector.extract_strided_slice %70 {offsets = [0, 0], sizes = [8, 32], strides = [1, 1]} : vector<8x128xf32> to vector<8x32xf32>
    %72 = vector.extract_strided_slice %70 {offsets = [0, 32], sizes = [8, 32], strides = [1, 1]} : vector<8x128xf32> to vector<8x32xf32>
    %73 = vector.extract_strided_slice %70 {offsets = [0, 64], sizes = [8, 32], strides = [1, 1]} : vector<8x128xf32> to vector<8x32xf32>
    %74 = vector.extract_strided_slice %70 {offsets = [0, 96], sizes = [8, 32], strides = [1, 1]} : vector<8x128xf32> to vector<8x32xf32>
    %75 = arith.mulf %72, %55 : vector<8x32xf32>
    %76 = arith.mulf %71, %73 : vector<8x32xf32>
    %77 = arith.addf %75, %76 : vector<8x32xf32>
    %78 = math.tanh %77 : vector<8x32xf32>
    %79 = arith.mulf %74, %78 : vector<8x32xf32>
    %c16 = arith.constant 16 : index
    %c0_24 = arith.constant 0 : index
    %80 = vector.load %arg9[%c16, %c0_24] : memref<64x32xf32, #tpu.memory_space<vmem>>, vector<8x32xf32>
    tpu.vector_store %arg9[%c16, %c0_24], %79 {strides = array<i32>} : memref<64x32xf32, #tpu.memory_space<vmem>>, vector<8x32xf32>,
    %81 = vector.extract_strided_slice %12 {offsets = [24, 0], sizes = [8, 128], strides = [1, 1]} : vector<64x128xf32> to vector<8x128xf32>
    %cst_25 = arith.constant dense<0.000000e+00> : vector<8x128xf32>
    %82 = tpu.matmul %79, %8, %cst_25 {dimension_numbers = #tpu.dot_dimension_numbers<[1], [0], [0], [1], [0, 0, 1, 1], [], []>} : vector<8x32xf32>, vector<32x128xf32>, vector<8x128xf32> -> vector<8x128xf32>
    %83 = arith.addf %81, %82 : vector<8x128xf32>
    %cst_26 = arith.constant 5.000000e-01 : f32
    %84 = vector.broadcast %cst_26 : f32 to vector<8x128xf32>
    %85 = arith.mulf %84, %83 : vector<8x128xf32>
    %86 = arith.select %5, %83, %85 : vector<8x128xi1>, vector<8x128xf32>
    %87 = math.tanh %86 : vector<8x128xf32>
    %cst_27 = arith.constant 5.000000e-01 : f32
    %88 = vector.broadcast %cst_27 : f32 to vector<8x128xf32>
    %89 = arith.mulf %88, %87 : vector<8x128xf32>
    %cst_28 = arith.constant 5.000000e-01 : f32
    %90 = vector.broadcast %cst_28 : f32 to vector<8x128xf32>
    %91 = arith.addf %89, %90 : vector<8x128xf32>
    %92 = arith.select %5, %87, %91 : vector<8x128xi1>, vector<8x128xf32>
    %93 = vector.extract_strided_slice %92 {offsets = [0, 0], sizes = [8, 32], strides = [1, 1]} : vector<8x128xf32> to vector<8x32xf32>
    %94 = vector.extract_strided_slice %92 {offsets = [0, 32], sizes = [8, 32], strides = [1, 1]} : vector<8x128xf32> to vector<8x32xf32>
    %95 = vector.extract_strided_slice %92 {offsets = [0, 64], sizes = [8, 32], strides = [1, 1]} : vector<8x128xf32> to vector<8x32xf32>
    %96 = vector.extract_strided_slice %92 {offsets = [0, 96], sizes = [8, 32], strides = [1, 1]} : vector<8x128xf32> to vector<8x32xf32>
    %97 = arith.mulf %94, %77 : vector<8x32xf32>
    %98 = arith.mulf %93, %95 : vector<8x32xf32>
    %99 = arith.addf %97, %98 : vector<8x32xf32>
    %100 = math.tanh %99 : vector<8x32xf32>
    %101 = arith.mulf %96, %100 : vector<8x32xf32>
    %c24 = arith.constant 24 : index
    %c0_29 = arith.constant 0 : index
    %102 = vector.load %arg9[%c24, %c0_29] : memref<64x32xf32, #tpu.memory_space<vmem>>, vector<8x32xf32>
    tpu.vector_store %arg9[%c24, %c0_29], %101 {strides = array<i32>} : memref<64x32xf32, #tpu.memory_space<vmem>>, vector<8x32xf32>,
    %103 = vector.extract_strided_slice %12 {offsets = [32, 0], sizes = [8, 128], strides = [1, 1]} : vector<64x128xf32> to vector<8x128xf32>
    %cst_30 = arith.constant dense<0.000000e+00> : vector<8x128xf32>
    %104 = tpu.matmul %101, %8, %cst_30 {dimension_numbers = #tpu.dot_dimension_numbers<[1], [0], [0], [1], [0, 0, 1, 1], [], []>} : vector<8x32xf32>, vector<32x128xf32>, vector<8x128xf32> -> vector<8x128xf32>
    %105 = arith.addf %103, %104 : vector<8x128xf32>
    %cst_31 = arith.constant 5.000000e-01 : f32
    %106 = vector.broadcast %cst_31 : f32 to vector<8x128xf32>
    %107 = arith.mulf %106, %105 : vector<8x128xf32>
    %108 = arith.select %5, %105, %107 : vector<8x128xi1>, vector<8x128xf32>
    %109 = math.tanh %108 : vector<8x128xf32>
    %cst_32 = arith.constant 5.000000e-01 : f32
    %110 = vector.broadcast %cst_32 : f32 to vector<8x128xf32>
    %111 = arith.mulf %110, %109 : vector<8x128xf32>
    %cst_33 = arith.constant 5.000000e-01 : f32
    %112 = vector.broadcast %cst_33 : f32 to vector<8x128xf32>
    %113 = arith.addf %111, %112 : vector<8x128xf32>
    %114 = arith.select %5, %109, %113 : vector<8x128xi1>, vector<8x128xf32>
    %115 = vector.extract_strided_slice %114 {offsets = [0, 0], sizes = [8, 32], strides = [1, 1]} : vector<8x128xf32> to vector<8x32xf32>
    %116 = vector.extract_strided_slice %114 {offsets = [0, 32], sizes = [8, 32], strides = [1, 1]} : vector<8x128xf32> to vector<8x32xf32>
    %117 = vector.extract_strided_slice %114 {offsets = [0, 64], sizes = [8, 32], strides = [1, 1]} : vector<8x128xf32> to vector<8x32xf32>
    %118 = vector.extract_strided_slice %114 {offsets = [0, 96], sizes = [8, 32], strides = [1, 1]} : vector<8x128xf32> to vector<8x32xf32>
    %119 = arith.mulf %116, %99 : vector<8x32xf32>
    %120 = arith.mulf %115, %117 : vector<8x32xf32>
    %121 = arith.addf %119, %120 : vector<8x32xf32>
    %122 = math.tanh %121 : vector<8x32xf32>
    %123 = arith.mulf %118, %122 : vector<8x32xf32>
    %c32 = arith.constant 32 : index
    %c0_34 = arith.constant 0 : index
    %124 = vector.load %arg9[%c32, %c0_34] : memref<64x32xf32, #tpu.memory_space<vmem>>, vector<8x32xf32>
    tpu.vector_store %arg9[%c32, %c0_34], %123 {strides = array<i32>} : memref<64x32xf32, #tpu.memory_space<vmem>>, vector<8x32xf32>,
    %125 = vector.extract_strided_slice %12 {offsets = [40, 0], sizes = [8, 128], strides = [1, 1]} : vector<64x128xf32> to vector<8x128xf32>
    %cst_35 = arith.constant dense<0.000000e+00> : vector<8x128xf32>
    %126 = tpu.matmul %123, %8, %cst_35 {dimension_numbers = #tpu.dot_dimension_numbers<[1], [0], [0], [1], [0, 0, 1, 1], [], []>} : vector<8x32xf32>, vector<32x128xf32>, vector<8x128xf32> -> vector<8x128xf32>
    %127 = arith.addf %125, %126 : vector<8x128xf32>
    %cst_36 = arith.constant 5.000000e-01 : f32
    %128 = vector.broadcast %cst_36 : f32 to vector<8x128xf32>
    %129 = arith.mulf %128, %127 : vector<8x128xf32>
    %130 = arith.select %5, %127, %129 : vector<8x128xi1>, vector<8x128xf32>
    %131 = math.tanh %130 : vector<8x128xf32>
    %cst_37 = arith.constant 5.000000e-01 : f32
    %132 = vector.broadcast %cst_37 : f32 to vector<8x128xf32>
    %133 = arith.mulf %132, %131 : vector<8x128xf32>
    %cst_38 = arith.constant 5.000000e-01 : f32
    %134 = vector.broadcast %cst_38 : f32 to vector<8x128xf32>
    %135 = arith.addf %133, %134 : vector<8x128xf32>
    %136 = arith.select %5, %131, %135 : vector<8x128xi1>, vector<8x128xf32>
    %137 = vector.extract_strided_slice %136 {offsets = [0, 0], sizes = [8, 32], strides = [1, 1]} : vector<8x128xf32> to vector<8x32xf32>
    %138 = vector.extract_strided_slice %136 {offsets = [0, 32], sizes = [8, 32], strides = [1, 1]} : vector<8x128xf32> to vector<8x32xf32>
    %139 = vector.extract_strided_slice %136 {offsets = [0, 64], sizes = [8, 32], strides = [1, 1]} : vector<8x128xf32> to vector<8x32xf32>
    %140 = vector.extract_strided_slice %136 {offsets = [0, 96], sizes = [8, 32], strides = [1, 1]} : vector<8x128xf32> to vector<8x32xf32>
    %141 = arith.mulf %138, %121 : vector<8x32xf32>
    %142 = arith.mulf %137, %139 : vector<8x32xf32>
    %143 = arith.addf %141, %142 : vector<8x32xf32>
    %144 = math.tanh %143 : vector<8x32xf32>
    %145 = arith.mulf %140, %144 : vector<8x32xf32>
    %c40 = arith.constant 40 : index
    %c0_39 = arith.constant 0 : index
    %146 = vector.load %arg9[%c40, %c0_39] : memref<64x32xf32, #tpu.memory_space<vmem>>, vector<8x32xf32>
    tpu.vector_store %arg9[%c40, %c0_39], %145 {strides = array<i32>} : memref<64x32xf32, #tpu.memory_space<vmem>>, vector<8x32xf32>,
    %147 = vector.extract_strided_slice %12 {offsets = [48, 0], sizes = [8, 128], strides = [1, 1]} : vector<64x128xf32> to vector<8x128xf32>
    %cst_40 = arith.constant dense<0.000000e+00> : vector<8x128xf32>
    %148 = tpu.matmul %145, %8, %cst_40 {dimension_numbers = #tpu.dot_dimension_numbers<[1], [0], [0], [1], [0, 0, 1, 1], [], []>} : vector<8x32xf32>, vector<32x128xf32>, vector<8x128xf32> -> vector<8x128xf32>
    %149 = arith.addf %147, %148 : vector<8x128xf32>
    %cst_41 = arith.constant 5.000000e-01 : f32
    %150 = vector.broadcast %cst_41 : f32 to vector<8x128xf32>
    %151 = arith.mulf %150, %149 : vector<8x128xf32>
    %152 = arith.select %5, %149, %151 : vector<8x128xi1>, vector<8x128xf32>
    %153 = math.tanh %152 : vector<8x128xf32>
    %cst_42 = arith.constant 5.000000e-01 : f32
    %154 = vector.broadcast %cst_42 : f32 to vector<8x128xf32>
    %155 = arith.mulf %154, %153 : vector<8x128xf32>
    %cst_43 = arith.constant 5.000000e-01 : f32
    %156 = vector.broadcast %cst_43 : f32 to vector<8x128xf32>
    %157 = arith.addf %155, %156 : vector<8x128xf32>
    %158 = arith.select %5, %153, %157 : vector<8x128xi1>, vector<8x128xf32>
    %159 = vector.extract_strided_slice %158 {offsets = [0, 0], sizes = [8, 32], strides = [1, 1]} : vector<8x128xf32> to vector<8x32xf32>
    %160 = vector.extract_strided_slice %158 {offsets = [0, 32], sizes = [8, 32], strides = [1, 1]} : vector<8x128xf32> to vector<8x32xf32>
    %161 = vector.extract_strided_slice %158 {offsets = [0, 64], sizes = [8, 32], strides = [1, 1]} : vector<8x128xf32> to vector<8x32xf32>
    %162 = vector.extract_strided_slice %158 {offsets = [0, 96], sizes = [8, 32], strides = [1, 1]} : vector<8x128xf32> to vector<8x32xf32>
    %163 = arith.mulf %160, %143 : vector<8x32xf32>
    %164 = arith.mulf %159, %161 : vector<8x32xf32>
    %165 = arith.addf %163, %164 : vector<8x32xf32>
    %166 = math.tanh %165 : vector<8x32xf32>
    %167 = arith.mulf %162, %166 : vector<8x32xf32>
    %c48 = arith.constant 48 : index
    %c0_44 = arith.constant 0 : index
    %168 = vector.load %arg9[%c48, %c0_44] : memref<64x32xf32, #tpu.memory_space<vmem>>, vector<8x32xf32>
    tpu.vector_store %arg9[%c48, %c0_44], %167 {strides = array<i32>} : memref<64x32xf32, #tpu.memory_space<vmem>>, vector<8x32xf32>,
    %169 = vector.extract_strided_slice %12 {offsets = [56, 0], sizes = [8, 128], strides = [1, 1]} : vector<64x128xf32> to vector<8x128xf32>
    %cst_45 = arith.constant dense<0.000000e+00> : vector<8x128xf32>
    %170 = tpu.matmul %167, %8, %cst_45 {dimension_numbers = #tpu.dot_dimension_numbers<[1], [0], [0], [1], [0, 0, 1, 1], [], []>} : vector<8x32xf32>, vector<32x128xf32>, vector<8x128xf32> -> vector<8x128xf32>
    %171 = arith.addf %169, %170 : vector<8x128xf32>
    %cst_46 = arith.constant 5.000000e-01 : f32
    %172 = vector.broadcast %cst_46 : f32 to vector<8x128xf32>
    %173 = arith.mulf %172, %171 : vector<8x128xf32>
    %174 = arith.select %5, %171, %173 : vector<8x128xi1>, vector<8x128xf32>
    %175 = math.tanh %174 : vector<8x128xf32>
    %cst_47 = arith.constant 5.000000e-01 : f32
    %176 = vector.broadcast %cst_47 : f32 to vector<8x128xf32>
    %177 = arith.mulf %176, %175 : vector<8x128xf32>
    %cst_48 = arith.constant 5.000000e-01 : f32
    %178 = vector.broadcast %cst_48 : f32 to vector<8x128xf32>
    %179 = arith.addf %177, %178 : vector<8x128xf32>
    %180 = arith.select %5, %175, %179 : vector<8x128xi1>, vector<8x128xf32>
    %181 = vector.extract_strided_slice %180 {offsets = [0, 0], sizes = [8, 32], strides = [1, 1]} : vector<8x128xf32> to vector<8x32xf32>
    %182 = vector.extract_strided_slice %180 {offsets = [0, 32], sizes = [8, 32], strides = [1, 1]} : vector<8x128xf32> to vector<8x32xf32>
    %183 = vector.extract_strided_slice %180 {offsets = [0, 64], sizes = [8, 32], strides = [1, 1]} : vector<8x128xf32> to vector<8x32xf32>
    %184 = vector.extract_strided_slice %180 {offsets = [0, 96], sizes = [8, 32], strides = [1, 1]} : vector<8x128xf32> to vector<8x32xf32>
    %185 = arith.mulf %182, %165 : vector<8x32xf32>
    %186 = arith.mulf %181, %183 : vector<8x32xf32>
    %187 = arith.addf %185, %186 : vector<8x32xf32>
    %188 = math.tanh %187 : vector<8x32xf32>
    %189 = arith.mulf %184, %188 : vector<8x32xf32>
    %c56 = arith.constant 56 : index
    %c0_49 = arith.constant 0 : index
    %190 = vector.load %arg9[%c56, %c0_49] : memref<64x32xf32, #tpu.memory_space<vmem>>, vector<8x32xf32>
    tpu.vector_store %arg9[%c56, %c0_49], %189 {strides = array<i32>} : memref<64x32xf32, #tpu.memory_space<vmem>>, vector<8x32xf32>,
    %c0_50 = arith.constant 0 : index
    %c0_51 = arith.constant 0 : index
    %c0_52 = arith.constant 0 : index
    %191 = vector.load %arg7[%c0_50, %c0_51, %c0_52] : memref<2x8x32xf32, #tpu.memory_space<vmem>>, vector<1x8x32xf32>
    %192 = vector.shape_cast %191 : vector<1x8x32xf32> to vector<8x32xf32>
    %193 = vector.shape_cast %189 : vector<8x32xf32> to vector<1x8x32xf32>
    tpu.vector_store %arg7[%c0_50, %c0_51, %c0_52], %193 {strides = array<i32>} : memref<2x8x32xf32, #tpu.memory_space<vmem>>, vector<1x8x32xf32>,
    %c0_53 = arith.constant 0 : index
    %c0_54 = arith.constant 0 : index
    %c0_55 = arith.constant 0 : index
    %194 = vector.load %arg8[%c0_53, %c0_54, %c0_55] : memref<2x8x32xf32, #tpu.memory_space<vmem>>, vector<1x8x32xf32>
    %195 = vector.shape_cast %194 : vector<1x8x32xf32> to vector<8x32xf32>
    %196 = vector.shape_cast %187 : vector<8x32xf32> to vector<1x8x32xf32>
    tpu.vector_store %arg8[%c0_53, %c0_54, %c0_55], %196 {strides = array<i32>} : memref<2x8x32xf32, #tpu.memory_space<vmem>>, vector<1x8x32xf32>,
    %c0_56 = arith.constant 0 : index
    %c0_57 = arith.constant 0 : index
    %197 = vector.load %arg9[%c0_56, %c0_57] : memref<64x32xf32, #tpu.memory_space<vmem>>, vector<64x32xf32>
    %c0_58 = arith.constant 0 : index
    %c0_59 = arith.constant 0 : index
    %198 = vector.load %arg4[%c0_58, %c0_59] : memref<32x128xf32, #tpu.memory_space<vmem>>, vector<32x128xf32>
    %c0_60 = arith.constant 0 : index
    %c0_61 = arith.constant 0 : index
    %199 = vector.load %arg5[%c0_60, %c0_61] : memref<32x128xf32, #tpu.memory_space<vmem>>, vector<32x128xf32>
    %c0_62 = arith.constant 0 : index
    %c0_63 = arith.constant 0 : index
    %200 = vector.load %arg6[%c0_62, %c0_63] : memref<1x128xf32, #tpu.memory_space<vmem>>, vector<1x128xf32>
    %cst_64 = arith.constant dense<0.000000e+00> : vector<64x128xf32>
    %201 = tpu.matmul %197, %198, %cst_64 {dimension_numbers = #tpu.dot_dimension_numbers<[1], [0], [0], [1], [0, 0, 1, 1], [], []>} : vector<64x32xf32>, vector<32x128xf32>, vector<64x128xf32> -> vector<64x128xf32>
    %202 = vector.broadcast %200 : vector<1x128xf32> to vector<64x128xf32>
    %203 = arith.addf %201, %202 : vector<64x128xf32>
    %cst_65 = arith.constant 0.000000e+00 : f32
    %204 = vector.broadcast %cst_65 : f32 to vector<8x32xf32>
    %cst_66 = arith.constant 0.000000e+00 : f32
    %205 = vector.broadcast %cst_66 : f32 to vector<8x32xf32>
    %206 = vector.extract_strided_slice %203 {offsets = [0, 0], sizes = [8, 128], strides = [1, 1]} : vector<64x128xf32> to vector<8x128xf32>
    %cst_67 = arith.constant dense<0.000000e+00> : vector<8x128xf32>
    %207 = tpu.matmul %204, %199, %cst_67 {dimension_numbers = #tpu.dot_dimension_numbers<[1], [0], [0], [1], [0, 0, 1, 1], [], []>} : vector<8x32xf32>, vector<32x128xf32>, vector<8x128xf32> -> vector<8x128xf32>
    %208 = arith.addf %206, %207 : vector<8x128xf32>
    %cst_68 = arith.constant 5.000000e-01 : f32
    %209 = vector.broadcast %cst_68 : f32 to vector<8x128xf32>
    %210 = arith.mulf %209, %208 : vector<8x128xf32>
    %211 = arith.select %5, %208, %210 : vector<8x128xi1>, vector<8x128xf32>
    %212 = math.tanh %211 : vector<8x128xf32>
    %cst_69 = arith.constant 5.000000e-01 : f32
    %213 = vector.broadcast %cst_69 : f32 to vector<8x128xf32>
    %214 = arith.mulf %213, %212 : vector<8x128xf32>
    %cst_70 = arith.constant 5.000000e-01 : f32
    %215 = vector.broadcast %cst_70 : f32 to vector<8x128xf32>
    %216 = arith.addf %214, %215 : vector<8x128xf32>
    %217 = arith.select %5, %212, %216 : vector<8x128xi1>, vector<8x128xf32>
    %218 = vector.extract_strided_slice %217 {offsets = [0, 0], sizes = [8, 32], strides = [1, 1]} : vector<8x128xf32> to vector<8x32xf32>
    %219 = vector.extract_strided_slice %217 {offsets = [0, 32], sizes = [8, 32], strides = [1, 1]} : vector<8x128xf32> to vector<8x32xf32>
    %220 = vector.extract_strided_slice %217 {offsets = [0, 64], sizes = [8, 32], strides = [1, 1]} : vector<8x128xf32> to vector<8x32xf32>
    %221 = vector.extract_strided_slice %217 {offsets = [0, 96], sizes = [8, 32], strides = [1, 1]} : vector<8x128xf32> to vector<8x32xf32>
    %222 = arith.mulf %219, %205 : vector<8x32xf32>
    %223 = arith.mulf %218, %220 : vector<8x32xf32>
    %224 = arith.addf %222, %223 : vector<8x32xf32>
    %225 = math.tanh %224 : vector<8x32xf32>
    %226 = arith.mulf %221, %225 : vector<8x32xf32>
    %227 = vector.extract_strided_slice %203 {offsets = [8, 0], sizes = [8, 128], strides = [1, 1]} : vector<64x128xf32> to vector<8x128xf32>
    %cst_71 = arith.constant dense<0.000000e+00> : vector<8x128xf32>
    %228 = tpu.matmul %226, %199, %cst_71 {dimension_numbers = #tpu.dot_dimension_numbers<[1], [0], [0], [1], [0, 0, 1, 1], [], []>} : vector<8x32xf32>, vector<32x128xf32>, vector<8x128xf32> -> vector<8x128xf32>
    %229 = arith.addf %227, %228 : vector<8x128xf32>
    %cst_72 = arith.constant 5.000000e-01 : f32
    %230 = vector.broadcast %cst_72 : f32 to vector<8x128xf32>
    %231 = arith.mulf %230, %229 : vector<8x128xf32>
    %232 = arith.select %5, %229, %231 : vector<8x128xi1>, vector<8x128xf32>
    %233 = math.tanh %232 : vector<8x128xf32>
    %cst_73 = arith.constant 5.000000e-01 : f32
    %234 = vector.broadcast %cst_73 : f32 to vector<8x128xf32>
    %235 = arith.mulf %234, %233 : vector<8x128xf32>
    %cst_74 = arith.constant 5.000000e-01 : f32
    %236 = vector.broadcast %cst_74 : f32 to vector<8x128xf32>
    %237 = arith.addf %235, %236 : vector<8x128xf32>
    %238 = arith.select %5, %233, %237 : vector<8x128xi1>, vector<8x128xf32>
    %239 = vector.extract_strided_slice %238 {offsets = [0, 0], sizes = [8, 32], strides = [1, 1]} : vector<8x128xf32> to vector<8x32xf32>
    %240 = vector.extract_strided_slice %238 {offsets = [0, 32], sizes = [8, 32], strides = [1, 1]} : vector<8x128xf32> to vector<8x32xf32>
    %241 = vector.extract_strided_slice %238 {offsets = [0, 64], sizes = [8, 32], strides = [1, 1]} : vector<8x128xf32> to vector<8x32xf32>
    %242 = vector.extract_strided_slice %238 {offsets = [0, 96], sizes = [8, 32], strides = [1, 1]} : vector<8x128xf32> to vector<8x32xf32>
    %243 = arith.mulf %240, %224 : vector<8x32xf32>
    %244 = arith.mulf %239, %241 : vector<8x32xf32>
    %245 = arith.addf %243, %244 : vector<8x32xf32>
    %246 = math.tanh %245 : vector<8x32xf32>
    %247 = arith.mulf %242, %246 : vector<8x32xf32>
    %248 = vector.extract_strided_slice %203 {offsets = [16, 0], sizes = [8, 128], strides = [1, 1]} : vector<64x128xf32> to vector<8x128xf32>
    %cst_75 = arith.constant dense<0.000000e+00> : vector<8x128xf32>
    %249 = tpu.matmul %247, %199, %cst_75 {dimension_numbers = #tpu.dot_dimension_numbers<[1], [0], [0], [1], [0, 0, 1, 1], [], []>} : vector<8x32xf32>, vector<32x128xf32>, vector<8x128xf32> -> vector<8x128xf32>
    %250 = arith.addf %248, %249 : vector<8x128xf32>
    %cst_76 = arith.constant 5.000000e-01 : f32
    %251 = vector.broadcast %cst_76 : f32 to vector<8x128xf32>
    %252 = arith.mulf %251, %250 : vector<8x128xf32>
    %253 = arith.select %5, %250, %252 : vector<8x128xi1>, vector<8x128xf32>
    %254 = math.tanh %253 : vector<8x128xf32>
    %cst_77 = arith.constant 5.000000e-01 : f32
    %255 = vector.broadcast %cst_77 : f32 to vector<8x128xf32>
    %256 = arith.mulf %255, %254 : vector<8x128xf32>
    %cst_78 = arith.constant 5.000000e-01 : f32
    %257 = vector.broadcast %cst_78 : f32 to vector<8x128xf32>
    %258 = arith.addf %256, %257 : vector<8x128xf32>
    %259 = arith.select %5, %254, %258 : vector<8x128xi1>, vector<8x128xf32>
    %260 = vector.extract_strided_slice %259 {offsets = [0, 0], sizes = [8, 32], strides = [1, 1]} : vector<8x128xf32> to vector<8x32xf32>
    %261 = vector.extract_strided_slice %259 {offsets = [0, 32], sizes = [8, 32], strides = [1, 1]} : vector<8x128xf32> to vector<8x32xf32>
    %262 = vector.extract_strided_slice %259 {offsets = [0, 64], sizes = [8, 32], strides = [1, 1]} : vector<8x128xf32> to vector<8x32xf32>
    %263 = vector.extract_strided_slice %259 {offsets = [0, 96], sizes = [8, 32], strides = [1, 1]} : vector<8x128xf32> to vector<8x32xf32>
    %264 = arith.mulf %261, %245 : vector<8x32xf32>
    %265 = arith.mulf %260, %262 : vector<8x32xf32>
    %266 = arith.addf %264, %265 : vector<8x32xf32>
    %267 = math.tanh %266 : vector<8x32xf32>
    %268 = arith.mulf %263, %267 : vector<8x32xf32>
    %269 = vector.extract_strided_slice %203 {offsets = [24, 0], sizes = [8, 128], strides = [1, 1]} : vector<64x128xf32> to vector<8x128xf32>
    %cst_79 = arith.constant dense<0.000000e+00> : vector<8x128xf32>
    %270 = tpu.matmul %268, %199, %cst_79 {dimension_numbers = #tpu.dot_dimension_numbers<[1], [0], [0], [1], [0, 0, 1, 1], [], []>} : vector<8x32xf32>, vector<32x128xf32>, vector<8x128xf32> -> vector<8x128xf32>
    %271 = arith.addf %269, %270 : vector<8x128xf32>
    %cst_80 = arith.constant 5.000000e-01 : f32
    %272 = vector.broadcast %cst_80 : f32 to vector<8x128xf32>
    %273 = arith.mulf %272, %271 : vector<8x128xf32>
    %274 = arith.select %5, %271, %273 : vector<8x128xi1>, vector<8x128xf32>
    %275 = math.tanh %274 : vector<8x128xf32>
    %cst_81 = arith.constant 5.000000e-01 : f32
    %276 = vector.broadcast %cst_81 : f32 to vector<8x128xf32>
    %277 = arith.mulf %276, %275 : vector<8x128xf32>
    %cst_82 = arith.constant 5.000000e-01 : f32
    %278 = vector.broadcast %cst_82 : f32 to vector<8x128xf32>
    %279 = arith.addf %277, %278 : vector<8x128xf32>
    %280 = arith.select %5, %275, %279 : vector<8x128xi1>, vector<8x128xf32>
    %281 = vector.extract_strided_slice %280 {offsets = [0, 0], sizes = [8, 32], strides = [1, 1]} : vector<8x128xf32> to vector<8x32xf32>
    %282 = vector.extract_strided_slice %280 {offsets = [0, 32], sizes = [8, 32], strides = [1, 1]} : vector<8x128xf32> to vector<8x32xf32>
    %283 = vector.extract_strided_slice %280 {offsets = [0, 64], sizes = [8, 32], strides = [1, 1]} : vector<8x128xf32> to vector<8x32xf32>
    %284 = vector.extract_strided_slice %280 {offsets = [0, 96], sizes = [8, 32], strides = [1, 1]} : vector<8x128xf32> to vector<8x32xf32>
    %285 = arith.mulf %282, %266 : vector<8x32xf32>
    %286 = arith.mulf %281, %283 : vector<8x32xf32>
    %287 = arith.addf %285, %286 : vector<8x32xf32>
    %288 = math.tanh %287 : vector<8x32xf32>
    %289 = arith.mulf %284, %288 : vector<8x32xf32>
    %290 = vector.extract_strided_slice %203 {offsets = [32, 0], sizes = [8, 128], strides = [1, 1]} : vector<64x128xf32> to vector<8x128xf32>
    %cst_83 = arith.constant dense<0.000000e+00> : vector<8x128xf32>
    %291 = tpu.matmul %289, %199, %cst_83 {dimension_numbers = #tpu.dot_dimension_numbers<[1], [0], [0], [1], [0, 0, 1, 1], [], []>} : vector<8x32xf32>, vector<32x128xf32>, vector<8x128xf32> -> vector<8x128xf32>
    %292 = arith.addf %290, %291 : vector<8x128xf32>
    %cst_84 = arith.constant 5.000000e-01 : f32
    %293 = vector.broadcast %cst_84 : f32 to vector<8x128xf32>
    %294 = arith.mulf %293, %292 : vector<8x128xf32>
    %295 = arith.select %5, %292, %294 : vector<8x128xi1>, vector<8x128xf32>
    %296 = math.tanh %295 : vector<8x128xf32>
    %cst_85 = arith.constant 5.000000e-01 : f32
    %297 = vector.broadcast %cst_85 : f32 to vector<8x128xf32>
    %298 = arith.mulf %297, %296 : vector<8x128xf32>
    %cst_86 = arith.constant 5.000000e-01 : f32
    %299 = vector.broadcast %cst_86 : f32 to vector<8x128xf32>
    %300 = arith.addf %298, %299 : vector<8x128xf32>
    %301 = arith.select %5, %296, %300 : vector<8x128xi1>, vector<8x128xf32>
    %302 = vector.extract_strided_slice %301 {offsets = [0, 0], sizes = [8, 32], strides = [1, 1]} : vector<8x128xf32> to vector<8x32xf32>
    %303 = vector.extract_strided_slice %301 {offsets = [0, 32], sizes = [8, 32], strides = [1, 1]} : vector<8x128xf32> to vector<8x32xf32>
    %304 = vector.extract_strided_slice %301 {offsets = [0, 64], sizes = [8, 32], strides = [1, 1]} : vector<8x128xf32> to vector<8x32xf32>
    %305 = vector.extract_strided_slice %301 {offsets = [0, 96], sizes = [8, 32], strides = [1, 1]} : vector<8x128xf32> to vector<8x32xf32>
    %306 = arith.mulf %303, %287 : vector<8x32xf32>
    %307 = arith.mulf %302, %304 : vector<8x32xf32>
    %308 = arith.addf %306, %307 : vector<8x32xf32>
    %309 = math.tanh %308 : vector<8x32xf32>
    %310 = arith.mulf %305, %309 : vector<8x32xf32>
    %311 = vector.extract_strided_slice %203 {offsets = [40, 0], sizes = [8, 128], strides = [1, 1]} : vector<64x128xf32> to vector<8x128xf32>
    %cst_87 = arith.constant dense<0.000000e+00> : vector<8x128xf32>
    %312 = tpu.matmul %310, %199, %cst_87 {dimension_numbers = #tpu.dot_dimension_numbers<[1], [0], [0], [1], [0, 0, 1, 1], [], []>} : vector<8x32xf32>, vector<32x128xf32>, vector<8x128xf32> -> vector<8x128xf32>
    %313 = arith.addf %311, %312 : vector<8x128xf32>
    %cst_88 = arith.constant 5.000000e-01 : f32
    %314 = vector.broadcast %cst_88 : f32 to vector<8x128xf32>
    %315 = arith.mulf %314, %313 : vector<8x128xf32>
    %316 = arith.select %5, %313, %315 : vector<8x128xi1>, vector<8x128xf32>
    %317 = math.tanh %316 : vector<8x128xf32>
    %cst_89 = arith.constant 5.000000e-01 : f32
    %318 = vector.broadcast %cst_89 : f32 to vector<8x128xf32>
    %319 = arith.mulf %318, %317 : vector<8x128xf32>
    %cst_90 = arith.constant 5.000000e-01 : f32
    %320 = vector.broadcast %cst_90 : f32 to vector<8x128xf32>
    %321 = arith.addf %319, %320 : vector<8x128xf32>
    %322 = arith.select %5, %317, %321 : vector<8x128xi1>, vector<8x128xf32>
    %323 = vector.extract_strided_slice %322 {offsets = [0, 0], sizes = [8, 32], strides = [1, 1]} : vector<8x128xf32> to vector<8x32xf32>
    %324 = vector.extract_strided_slice %322 {offsets = [0, 32], sizes = [8, 32], strides = [1, 1]} : vector<8x128xf32> to vector<8x32xf32>
    %325 = vector.extract_strided_slice %322 {offsets = [0, 64], sizes = [8, 32], strides = [1, 1]} : vector<8x128xf32> to vector<8x32xf32>
    %326 = vector.extract_strided_slice %322 {offsets = [0, 96], sizes = [8, 32], strides = [1, 1]} : vector<8x128xf32> to vector<8x32xf32>
    %327 = arith.mulf %324, %308 : vector<8x32xf32>
    %328 = arith.mulf %323, %325 : vector<8x32xf32>
    %329 = arith.addf %327, %328 : vector<8x32xf32>
    %330 = math.tanh %329 : vector<8x32xf32>
    %331 = arith.mulf %326, %330 : vector<8x32xf32>
    %332 = vector.extract_strided_slice %203 {offsets = [48, 0], sizes = [8, 128], strides = [1, 1]} : vector<64x128xf32> to vector<8x128xf32>
    %cst_91 = arith.constant dense<0.000000e+00> : vector<8x128xf32>
    %333 = tpu.matmul %331, %199, %cst_91 {dimension_numbers = #tpu.dot_dimension_numbers<[1], [0], [0], [1], [0, 0, 1, 1], [], []>} : vector<8x32xf32>, vector<32x128xf32>, vector<8x128xf32> -> vector<8x128xf32>
    %334 = arith.addf %332, %333 : vector<8x128xf32>
    %cst_92 = arith.constant 5.000000e-01 : f32
    %335 = vector.broadcast %cst_92 : f32 to vector<8x128xf32>
    %336 = arith.mulf %335, %334 : vector<8x128xf32>
    %337 = arith.select %5, %334, %336 : vector<8x128xi1>, vector<8x128xf32>
    %338 = math.tanh %337 : vector<8x128xf32>
    %cst_93 = arith.constant 5.000000e-01 : f32
    %339 = vector.broadcast %cst_93 : f32 to vector<8x128xf32>
    %340 = arith.mulf %339, %338 : vector<8x128xf32>
    %cst_94 = arith.constant 5.000000e-01 : f32
    %341 = vector.broadcast %cst_94 : f32 to vector<8x128xf32>
    %342 = arith.addf %340, %341 : vector<8x128xf32>
    %343 = arith.select %5, %338, %342 : vector<8x128xi1>, vector<8x128xf32>
    %344 = vector.extract_strided_slice %343 {offsets = [0, 0], sizes = [8, 32], strides = [1, 1]} : vector<8x128xf32> to vector<8x32xf32>
    %345 = vector.extract_strided_slice %343 {offsets = [0, 32], sizes = [8, 32], strides = [1, 1]} : vector<8x128xf32> to vector<8x32xf32>
    %346 = vector.extract_strided_slice %343 {offsets = [0, 64], sizes = [8, 32], strides = [1, 1]} : vector<8x128xf32> to vector<8x32xf32>
    %347 = vector.extract_strided_slice %343 {offsets = [0, 96], sizes = [8, 32], strides = [1, 1]} : vector<8x128xf32> to vector<8x32xf32>
    %348 = arith.mulf %345, %329 : vector<8x32xf32>
    %349 = arith.mulf %344, %346 : vector<8x32xf32>
    %350 = arith.addf %348, %349 : vector<8x32xf32>
    %351 = math.tanh %350 : vector<8x32xf32>
    %352 = arith.mulf %347, %351 : vector<8x32xf32>
    %353 = vector.extract_strided_slice %203 {offsets = [56, 0], sizes = [8, 128], strides = [1, 1]} : vector<64x128xf32> to vector<8x128xf32>
    %cst_95 = arith.constant dense<0.000000e+00> : vector<8x128xf32>
    %354 = tpu.matmul %352, %199, %cst_95 {dimension_numbers = #tpu.dot_dimension_numbers<[1], [0], [0], [1], [0, 0, 1, 1], [], []>} : vector<8x32xf32>, vector<32x128xf32>, vector<8x128xf32> -> vector<8x128xf32>
    %355 = arith.addf %353, %354 : vector<8x128xf32>
    %cst_96 = arith.constant 5.000000e-01 : f32
    %356 = vector.broadcast %cst_96 : f32 to vector<8x128xf32>
    %357 = arith.mulf %356, %355 : vector<8x128xf32>
    %358 = arith.select %5, %355, %357 : vector<8x128xi1>, vector<8x128xf32>
    %359 = math.tanh %358 : vector<8x128xf32>
    %cst_97 = arith.constant 5.000000e-01 : f32
    %360 = vector.broadcast %cst_97 : f32 to vector<8x128xf32>
    %361 = arith.mulf %360, %359 : vector<8x128xf32>
    %cst_98 = arith.constant 5.000000e-01 : f32
    %362 = vector.broadcast %cst_98 : f32 to vector<8x128xf32>
    %363 = arith.addf %361, %362 : vector<8x128xf32>
    %364 = arith.select %5, %359, %363 : vector<8x128xi1>, vector<8x128xf32>
    %365 = vector.extract_strided_slice %364 {offsets = [0, 0], sizes = [8, 32], strides = [1, 1]} : vector<8x128xf32> to vector<8x32xf32>
    %366 = vector.extract_strided_slice %364 {offsets = [0, 32], sizes = [8, 32], strides = [1, 1]} : vector<8x128xf32> to vector<8x32xf32>
    %367 = vector.extract_strided_slice %364 {offsets = [0, 64], sizes = [8, 32], strides = [1, 1]} : vector<8x128xf32> to vector<8x32xf32>
    %368 = vector.extract_strided_slice %364 {offsets = [0, 96], sizes = [8, 32], strides = [1, 1]} : vector<8x128xf32> to vector<8x32xf32>
    %369 = arith.mulf %366, %350 : vector<8x32xf32>
    %370 = arith.mulf %365, %367 : vector<8x32xf32>
    %371 = arith.addf %369, %370 : vector<8x32xf32>
    %372 = math.tanh %371 : vector<8x32xf32>
    %373 = arith.mulf %368, %372 : vector<8x32xf32>
    %c1 = arith.constant 1 : index
    %c0_99 = arith.constant 0 : index
    %c0_100 = arith.constant 0 : index
    %374 = vector.load %arg7[%c1, %c0_99, %c0_100] : memref<2x8x32xf32, #tpu.memory_space<vmem>>, vector<1x8x32xf32>
    %375 = vector.shape_cast %374 : vector<1x8x32xf32> to vector<8x32xf32>
    %376 = vector.shape_cast %373 : vector<8x32xf32> to vector<1x8x32xf32>
    tpu.vector_store %arg7[%c1, %c0_99, %c0_100], %376 {strides = array<i32>} : memref<2x8x32xf32, #tpu.memory_space<vmem>>, vector<1x8x32xf32>,
    %c1_101 = arith.constant 1 : index
    %c0_102 = arith.constant 0 : index
    %c0_103 = arith.constant 0 : index
    %377 = vector.load %arg8[%c1_101, %c0_102, %c0_103] : memref<2x8x32xf32, #tpu.memory_space<vmem>>, vector<1x8x32xf32>
    %378 = vector.shape_cast %377 : vector<1x8x32xf32> to vector<8x32xf32>
    %379 = vector.shape_cast %371 : vector<8x32xf32> to vector<1x8x32xf32>
    tpu.vector_store %arg8[%c1_101, %c0_102, %c0_103], %379 {strides = array<i32>} : memref<2x8x32xf32, #tpu.memory_space<vmem>>, vector<1x8x32xf32>,
    return
  }
}

</mosaic_0001>

<llo_original>
// kernel: encoder_forward.1
$region0: #{encoder_forward.1}
  #allocation0 [shape = 'u32[]', space=smem, size = 0x4, offset = 0x4, fixed_abs, tag = 'smem constant byte address 0x4 - core index']
  #allocation1 [shape = 'u32[144,128]{1,0:T(1,128)}', space=vmem, size = 0x12000, scoped, tag = 'internal scratch']
  #allocation2 [shape = 'f32[64,32]{1,0:T(8,128)}', space=vmem, size = 0x8000, scoped, tag = 'scratch operand']
  %s0 = inlined_call_operand.vmem [shape: f32[64,48], index: 0, kind: input, shape index: {}]
  %s1 = inlined_call_operand.vmem [shape: f32[48,128], index: 1, kind: input, shape index: {}]
  %s2 = inlined_call_operand.vmem [shape: f32[32,128], index: 2, kind: input, shape index: {}]
  %s3 = inlined_call_operand.vmem [shape: f32[1,128], index: 3, kind: input, shape index: {}]
  %s4 = inlined_call_operand.vmem [shape: f32[32,128], index: 4, kind: input, shape index: {}]
  %s5 = inlined_call_operand.hbm [shape: f32[32,128], index: 5, kind: input, shape index: {}]
  %s6 = inlined_call_operand.vmem [shape: f32[1,128], index: 6, kind: input, shape index: {}]
  %s7 = inlined_call_operand.vmem [shape: f32[2,8,32], index: 7, kind: output, shape index: {0}]
  %s8 = inlined_call_operand.vmem [shape: f32[2,8,32], index: 8, kind: output, shape index: {1}]
  %9 = xla_tuple %s7, %s8
  %s10 = sld [smem:[#allocation0]]
  $region50: #{encoder_forward.1} parent=0
    _
  %s12 = ssub.s32 1, %s10
  %s13 = scalar_select 0, %s12, %s10
  $region1: #{encoder_forward.1} parent=0
    #allocation3 [shape = 'u8[16384]{0}', space=vmem, size = 0x4000, scoped, tag = 'input window, operand 5, single buffered']
    #allocation4 [shape = 's32[1]{0}', space=sflag, size = 0x4, scoped, tag = 'scoped memory for encoder_forward.1']
    %14 = vsyncpa [#allocation4], 0
    // Predicated region
    $region2: #{encoder_forward.1} parent=1 // pred_check
      _
    $region3: #{encoder_forward.1} parent=1 // pred_check_branch
      %16 = sbr.rel (0) target = $region5
    $region4: #{encoder_forward.1} parent=1 // pred_region
      _
    $region5: #{encoder_forward.1} parent=1 // pred_fallthru
      _
    // Predicated region
    $region6: #{encoder_forward.1} parent=1 // pred_check
      _
    $region7: #{encoder_forward.1} parent=1 // pred_check_branch
      %18 = sbr.rel (0) target = $region9
    $region8: #{encoder_forward.1} parent=1 // pred_region
      _
    $region9: #{encoder_forward.1} parent=1 // pred_fallthru
      _
    // Predicated region
    $region10: #{encoder_forward.1} parent=1 // pred_check
      _
    $region11: #{encoder_forward.1} parent=1 // pred_check_branch
      %20 = sbr.rel (0) target = $region13
    $region12: #{encoder_forward.1} parent=1 // pred_region
      _
    $region13: #{encoder_forward.1} parent=1 // pred_fallthru
      _
    // Predicated region
    $region14: #{encoder_forward.1} parent=1 // pred_check
      _
    $region15: #{encoder_forward.1} parent=1 // pred_check_branch
      %22 = sbr.rel (0) target = $region17
    $region16: #{encoder_forward.1} parent=1 // pred_region
      _
    $region17: #{encoder_forward.1} parent=1 // pred_fallthru
      _
    // Predicated region
    $region18: #{encoder_forward.1} parent=1 // pred_check
      _
    $region19: #{encoder_forward.1} parent=1 // pred_check_branch
      %24 = sbr.rel (0) target = $region21
    $region20: #{encoder_forward.1} parent=1 // pred_region
      _
    $region21: #{encoder_forward.1} parent=1 // pred_fallthru
      _
    // Predicated region
    $region22: #{encoder_forward.1} parent=1 // pred_check
      _
    $region23: #{encoder_forward.1} parent=1 // pred_check_branch
      %26 = sbr.rel (0) target = $region25
    $region24: #{encoder_forward.1} parent=1 // pred_region
      %s28 = ssub.s32 512, 512
      %29 = vsyncadd [#allocation4], %s28
      %s30 = sshll.u32 [#allocation3], 4
      %s31 = int_to_ptr.vmem [resolvable:$true] %s30
      %36 = dma.hbm_to_vmem [thread:$0]  %s5, 512, %s31, [#allocation4], 128, 128, 8
    $region25: #{encoder_forward.1} parent=1 // pred_fallthru
      _
    // Predicated region
    $region26: #{encoder_forward.1} parent=1 // pred_check
      _
    $region27: #{encoder_forward.1} parent=1 // pred_check_branch
      %38 = sbr.rel (0) target = $region29
    $region28: #{encoder_forward.1} parent=1 // pred_region
      _
    $region29: #{encoder_forward.1} parent=1 // pred_fallthru
      _
    // Predicated region
    $region30: #{encoder_forward.1} parent=1 // pred_check
      _
    $region31: #{encoder_forward.1} parent=1 // pred_check_branch
      %40 = sbr.rel (0) target = $region33
    $region32: #{encoder_forward.1} parent=1 // pred_region
      %41 = dma.done [#allocation4], 512
    $region33: #{encoder_forward.1} parent=1 // pred_fallthru
      _
    %v42 = vlaneseq
    %v43 = vand.u32 %v42, 127
    %vm44 = vcmp.ge.s32.totalorder %v43, 64
    %vm45 = vcmp.lt.s32.totalorder %v43, 96
    %vm46 = vmand %vm44, %vm45
    %v47 = vld [vmem:[%s0] sm:$0xff]
    %v48 = vld [vmem:[%s0 + $0x8] sm:$0xff]
    %v49 = vld [vmem:[%s0 + $0x10] sm:$0xff]
    %v50 = vld [vmem:[%s0 + $0x18] sm:$0xff]
    %v51 = vld [vmem:[%s0 + $0x20] sm:$0xff]
    %v52 = vld [vmem:[%s0 + $0x28] sm:$0xff]
    %v53 = vld [vmem:[%s0 + $0x30] sm:$0xff]
    %v54 = vld [vmem:[%s0 + $0x38] sm:$0xff]
    %v55 = vld [vmem:[%s1] sm:$0xff]
    %v56 = vld [vmem:[%s1 + $0x8] sm:$0xff]
    %v57 = vld [vmem:[%s1 + $0x10] sm:$0xff]
    %v58 = vld [vmem:[%s1 + $0x18] sm:$0xff]
    %v59 = vld [vmem:[%s1 + $0x20] sm:$0xff]
    %v60 = vld [vmem:[%s1 + $0x28] sm:$0xff]
    %v61 = vld [vmem:[%s2] sm:$0xff]
    %v62 = vld [vmem:[%s2 + $0x8] sm:$0xff]
    %v63 = vld [vmem:[%s2 + $0x10] sm:$0xff]
    %v64 = vld [vmem:[%s2 + $0x18] sm:$0xff]
    %v65 = vld [vmem:[%s3] sm:$0x1]
    %v67 = vlaneseq
    %v68 = vshrl.u32 %v67, 7
    %v69 = vsub.s32 0, %v68
    %v70 = vrot.slane %v65, %v69
    %vm72 = vcmask 392192
    %v74 = vsel %vm72, %v47, 0
    %v77 = vsel %vm72, %v48, 0
    %v80 = vsel %vm72, %v49, 0
    %v83 = vsel %vm72, %v50, 0
    %v86 = vsel %vm72, %v51, 0
    %v89 = vsel %vm72, %v52, 0
    %v92 = vsel %vm72, %v53, 0
    %v95 = vsel %vm72, %v54, 0
    %97 = vmatprep.subr.mxu0 0.0
    %98 = vmatpush1.msra.mxu0 0.0
    %99 = vmatprep.subr.mxu0 0.0
    %100 = vmatpush1.msra.mxu0 0.0
    %101 = vmatprep.subr.mxu0 0.0
    %102 = vmatpush1.msra.mxu0 0.0
    %103 = vmatprep.subr.mxu0 0.0
    %104 = vmatpush1.msra.mxu0 0.0
    %105 = vmatprep.subr.mxu0 0.0
    %106 = vmatpush1.msra.mxu0 0.0
    %107 = vmatprep.subr.mxu0 0.0
    %108 = vmatpush1.msra.mxu0 0.0
    %109 = vmatprep.subr.mxu0 0.0
    %110 = vmatpush1.msra.mxu0 0.0
    %111 = vmatprep.subr.mxu0 0.0
    %112 = vmatpush1.msra.mxu0 0.0
    %113 = vmatprep.subr.mxu0 0.0
    %114 = vmatpush1.msra.mxu0 0.0
    %115 = vmatprep.subr.mxu0 0.0
    %116 = vmatpush1.msra.mxu0 0.0
    %117 = vmatprep.subr.mxu0 0.0
    %118 = vmatpush1.msra.mxu0 %v60
    %119 = vmatprep.subr.mxu0 0.0
    %120 = vmatpush1.msra.mxu0 %v59
    %121 = vmatprep.subr.mxu0 0.0
    %122 = vmatpush1.msra.mxu0 %v58
    %123 = vmatprep.subr.mxu0 0.0
    %124 = vmatpush1.msra.mxu0 %v57
    %125 = vmatprep.subr.mxu0 0.0
    %126 = vmatpush1.msra.mxu0 %v56
    %127 = vmatprep.subr.mxu0 0.0
    %128 = vmatpush1.msra.mxu0 %v55
    %129 = vmatprep.subr.mxu0 0.0
    %130 = vmatpush2.msra.mxu0 0.0
    %131 = vmatprep.subr.mxu0 0.0
    %132 = vmatpush2.msra.mxu0 0.0
    %133 = vmatprep.subr.mxu0 0.0
    %134 = vmatpush2.msra.mxu0 0.0
    %135 = vmatprep.subr.mxu0 0.0
    %136 = vmatpush2.msra.mxu0 0.0
    %137 = vmatprep.subr.mxu0 0.0
    %138 = vmatpush2.msra.mxu0 0.0
    %139 = vmatprep.subr.mxu0 0.0
    %140 = vmatpush2.msra.mxu0 0.0
    %141 = vmatprep.subr.mxu0 0.0
    %142 = vmatpush2.msra.mxu0 0.0
    %143 = vmatprep.subr.mxu0 0.0
    %144 = vmatpush2.msra.mxu0 0.0
    %145 = vmatprep.subr.mxu0 0.0
    %146 = vmatpush2.msra.mxu0 0.0
    %147 = vmatprep.subr.mxu0 0.0
    %148 = vmatpush2.msra.mxu0 0.0
    %149 = vmatprep.subr.mxu0 0.0
    %150 = vmatpush2.msra.mxu0 0.0
    %151 = vmatprep.subr.mxu0 0.0
    %152 = vmatpush2.msra.mxu0 0.0
    %153 = vmatprep.subr.mxu0 0.0
    %154 = vmatpush2.msra.mxu0 0.0
    %155 = vmatprep.subr.mxu0 0.0
    %156 = vmatpush2.msra.mxu0 0.0
    %157 = vmatprep.subr.mxu0 0.0
    %158 = vmatpush2.msra.mxu0 0.0
    %159 = vmatprep.subr.mxu0 0.0
    %160 = vmatpush2.msra.mxu0 0.0
    %161 = vmatprep.mubr.f32.mxu0 0.0
    %162 = vmatmul.mubr.f32.gmra.mxu0 %v74
    %v163 = vpop.f32.mrf.mxu0
    %v164 = vadd.f32 %v70, %v163
    %v165 = vpop.f32.mrf.mxu0
    %166 = vmatprep.mubr.f32.mxu0 0.0
    %167 = vmatmul.mubr.f32.gmra.mxu0 %v77
    %v168 = vpop.f32.mrf.mxu0
    %v169 = vadd.f32 %v70, %v168
    %v170 = vpop.f32.mrf.mxu0
    %171 = vmatprep.mubr.f32.mxu0 0.0
    %172 = vmatmul.mubr.f32.gmra.mxu0 %v80
    %v173 = vpop.f32.mrf.mxu0
    %v174 = vadd.f32 %v70, %v173
    %v175 = vpop.f32.mrf.mxu0
    %176 = vmatprep.mubr.f32.mxu0 0.0
    %177 = vmatmul.mubr.f32.gmra.mxu0 %v83
    %v178 = vpop.f32.mrf.mxu0
    %v179 = vadd.f32 %v70, %v178
    %v180 = vpop.f32.mrf.mxu0
    %181 = vmatprep.mubr.f32.mxu0 0.0
    %182 = vmatmul.mubr.f32.gmra.mxu0 %v86
    %v183 = vpop.f32.mrf.mxu0
    %v184 = vadd.f32 %v70, %v183
    %v185 = vpop.f32.mrf.mxu0
    %186 = vmatprep.mubr.f32.mxu0 0.0
    %187 = vmatmul.mubr.f32.gmra.mxu0 %v89
    %v188 = vpop.f32.mrf.mxu0
    %v189 = vadd.f32 %v70, %v188
    %v190 = vpop.f32.mrf.mxu0
    %191 = vmatprep.mubr.f32.mxu0 0.0
    %192 = vmatmul.mubr.f32.gmra.mxu0 %v92
    %v193 = vpop.f32.mrf.mxu0
    %v194 = vadd.f32 %v70, %v193
    %v195 = vpop.f32.mrf.mxu0
    %196 = vmatprep.mubr.f32.mxu0 0.0
    %197 = vmatmul.mubr.f32.gmra.mxu0 %v95
    %v198 = vpop.f32.mrf.mxu0
    %v199 = vadd.f32 %v70, %v198
    %v200 = vpop.f32.mrf.mxu0
    %201 = vdwg.mxu0
    %vm202 = vcmask 261120
    %v204 = vsel %vm202, 0.0, 0
    %206 = vmatprep.subr.mxu0 0.0
    %207 = vmatpush1.msra.mxu0 0.0
    %208 = vmatprep.subr.mxu0 0.0
    %209 = vmatpush1.msra.mxu0 0.0
    %210 = vmatprep.subr.mxu0 0.0
    %211 = vmatpush1.msra.mxu0 0.0
    %212 = vmatprep.subr.mxu0 0.0
    %213 = vmatpush1.msra.mxu0 0.0
    %214 = vmatprep.subr.mxu0 0.0
    %215 = vmatpush1.msra.mxu0 0.0
    %216 = vmatprep.subr.mxu0 0.0
    %217 = vmatpush1.msra.mxu0 0.0
    %218 = vmatprep.subr.mxu0 0.0
    %219 = vmatpush1.msra.mxu0 0.0
    %220 = vmatprep.subr.mxu0 0.0
    %221 = vmatpush1.msra.mxu0 0.0
    %222 = vmatprep.subr.mxu0 0.0
    %223 = vmatpush1.msra.mxu0 0.0
    %224 = vmatprep.subr.mxu0 0.0
    %225 = vmatpush1.msra.mxu0 0.0
    %226 = vmatprep.subr.mxu0 0.0
    %227 = vmatpush1.msra.mxu0 0.0
    %228 = vmatprep.subr.mxu0 0.0
    %229 = vmatpush1.msra.mxu0 0.0
    %230 = vmatprep.subr.mxu0 0.0
    %231 = vmatpush1.msra.mxu0 %v64
    %232 = vmatprep.subr.mxu0 0.0
    %233 = vmatpush1.msra.mxu0 %v63
    %234 = vmatprep.subr.mxu0 0.0
    %235 = vmatpush1.msra.mxu0 %v62
    %236 = vmatprep.subr.mxu0 0.0
    %237 = vmatpush1.msra.mxu0 %v61
    %238 = vmatprep.subr.mxu0 0.0
    %239 = vmatpush2.msra.mxu0 0.0
    %240 = vmatprep.subr.mxu0 0.0
    %241 = vmatpush2.msra.mxu0 0.0
    %242 = vmatprep.subr.mxu0 0.0
    %243 = vmatpush2.msra.mxu0 0.0
    %244 = vmatprep.subr.mxu0 0.0
    %245 = vmatpush2.msra.mxu0 0.0
    %246 = vmatprep.subr.mxu0 0.0
    %247 = vmatpush2.msra.mxu0 0.0
    %248 = vmatprep.subr.mxu0 0.0
    %249 = vmatpush2.msra.mxu0 0.0
    %250 = vmatprep.subr.mxu0 0.0
    %251 = vmatpush2.msra.mxu0 0.0
    %252 = vmatprep.subr.mxu0 0.0
    %253 = vmatpush2.msra.mxu0 0.0
    %254 = vmatprep.subr.mxu0 0.0
    %255 = vmatpush2.msra.mxu0 0.0
    %256 = vmatprep.subr.mxu0 0.0
    %257 = vmatpush2.msra.mxu0 0.0
    %258 = vmatprep.subr.mxu0 0.0
    %259 = vmatpush2.msra.mxu0 0.0
    %260 = vmatprep.subr.mxu0 0.0
    %261 = vmatpush2.msra.mxu0 0.0
    %262 = vmatprep.subr.mxu0 0.0
    %263 = vmatpush2.msra.mxu0 0.0
    %264 = vmatprep.subr.mxu0 0.0
    %265 = vmatpush2.msra.mxu0 0.0
    %266 = vmatprep.subr.mxu0 0.0
    %267 = vmatpush2.msra.mxu0 0.0
    %268 = vmatprep.subr.mxu0 0.0
    %269 = vmatpush2.msra.mxu0 0.0
    %270 = vmatprep.mubr.f32.mxu0 0.0
    %271 = vmatmul.mubr.f32.gmra.mxu0 %v204
    %v272 = vpop.f32.mrf.mxu0
    %v273 = vadd.f32 0.0, %v272
    %v274 = vpop.f32.mrf.mxu0
    %275 = vdwg.mxu0
    %v276 = vadd.f32 %v164, %v273
    %v277 = vmul.f32 %v276, 0.5
    %v278 = vsel %vm46, %v276, %v277
    %v279 = vtanh.pop %v278
    %v280 = vmul.f32 %v279, 0.5
    %v281 = vadd.f32 %v280, 0.5
    %v282 = vsel %vm46, %v279, %v281
    %v283 = vmul.f32 %v282, 0.0
    %285 = vrot.lane.b32.xlu0 %v282, 64
    %v286 = vpop.permute.xlu0 %285
    %v288 = vmul.f32 %v282, %v286
    %290 = vrot.lane.b32.xlu0 %v288, 32
    %v291 = vpop.permute.xlu0 %290
    %v293 = vadd.f32 %v283, %v291
    %v294 = vtanh.pop %v293
    %296 = vrot.lane.b32.xlu0 %v294, 64
    %v297 = vpop.permute.xlu0 %296
    %v299 = vmul.f32 %v282, %v297
    %301 = vrot.lane.b32.xlu0 %v299, 32
    %v302 = vpop.permute.xlu0 %301
    %304 = vst.msk [vmem:[#allocation2] sm:$0xff] %vm202, %v302
    %v305 = vsel %vm202, %v302, 0
    %307 = vmatprep.subr.mxu0 0.0
    %308 = vmatpush1.msra.mxu0 0.0
    %309 = vmatprep.subr.mxu0 0.0
    %310 = vmatpush1.msra.mxu0 0.0
    %311 = vmatprep.subr.mxu0 0.0
    %312 = vmatpush1.msra.mxu0 0.0
    %313 = vmatprep.subr.mxu0 0.0
    %314 = vmatpush1.msra.mxu0 0.0
    %315 = vmatprep.subr.mxu0 0.0
    %316 = vmatpush1.msra.mxu0 0.0
    %317 = vmatprep.subr.mxu0 0.0
    %318 = vmatpush1.msra.mxu0 0.0
    %319 = vmatprep.subr.mxu0 0.0
    %320 = vmatpush1.msra.mxu0 0.0
    %321 = vmatprep.subr.mxu0 0.0
    %322 = vmatpush1.msra.mxu0 0.0
    %323 = vmatprep.subr.mxu0 0.0
    %324 = vmatpush1.msra.mxu0 0.0
    %325 = vmatprep.subr.mxu0 0.0
    %326 = vmatpush1.msra.mxu0 0.0
    %327 = vmatprep.subr.mxu0 0.0
    %328 = vmatpush1.msra.mxu0 0.0
    %329 = vmatprep.subr.mxu0 0.0
    %330 = vmatpush1.msra.mxu0 0.0
    %331 = vmatprep.subr.mxu0 0.0
    %332 = vmatpush1.msra.mxu0 %v64
    %333 = vmatprep.subr.mxu0 0.0
    %334 = vmatpush1.msra.mxu0 %v63
    %335 = vmatprep.subr.mxu0 0.0
    %336 = vmatpush1.msra.mxu0 %v62
    %337 = vmatprep.subr.mxu0 0.0
    %338 = vmatpush1.msra.mxu0 %v61
    %339 = vmatprep.subr.mxu0 0.0
    %340 = vmatpush2.msra.mxu0 0.0
    %341 = vmatprep.subr.mxu0 0.0
    %342 = vmatpush2.msra.mxu0 0.0
    %343 = vmatprep.subr.mxu0 0.0
    %344 = vmatpush2.msra.mxu0 0.0
    %345 = vmatprep.subr.mxu0 0.0
    %346 = vmatpush2.msra.mxu0 0.0
    %347 = vmatprep.subr.mxu0 0.0
    %348 = vmatpush2.msra.mxu0 0.0
    %349 = vmatprep.subr.mxu0 0.0
    %350 = vmatpush2.msra.mxu0 0.0
    %351 = vmatprep.subr.mxu0 0.0
    %352 = vmatpush2.msra.mxu0 0.0
    %353 = vmatprep.subr.mxu0 0.0
    %354 = vmatpush2.msra.mxu0 0.0
    %355 = vmatprep.subr.mxu0 0.0
    %356 = vmatpush2.msra.mxu0 0.0
    %357 = vmatprep.subr.mxu0 0.0
    %358 = vmatpush2.msra.mxu0 0.0
    %359 = vmatprep.subr.mxu0 0.0
    %360 = vmatpush2.msra.mxu0 0.0
    %361 = vmatprep.subr.mxu0 0.0
    %362 = vmatpush2.msra.mxu0 0.0
    %363 = vmatprep.subr.mxu0 0.0
    %364 = vmatpush2.msra.mxu0 0.0
    %365 = vmatprep.subr.mxu0 0.0
    %366 = vmatpush2.msra.mxu0 0.0
    %367 = vmatprep.subr.mxu0 0.0
    %368 = vmatpush2.msra.mxu0 0.0
    %369 = vmatprep.subr.mxu0 0.0
    %370 = vmatpush2.msra.mxu0 0.0
    %371 = vmatprep.mubr.f32.mxu0 0.0
    %372 = vmatmul.mubr.f32.gmra.mxu0 %v305
    %v373 = vpop.f32.mrf.mxu0
    %v374 = vadd.f32 0.0, %v373
    %v375 = vpop.f32.mrf.mxu0
    %376 = vdwg.mxu0
    %v377 = vadd.f32 %v169, %v374
    %v378 = vmul.f32 %v377, 0.5
    %v379 = vsel %vm46, %v377, %v378
    %v380 = vtanh.pop %v379
    %v381 = vmul.f32 %v380, 0.5
    %v382 = vadd.f32 %v381, 0.5
    %v383 = vsel %vm46, %v380, %v382
    %v384 = vmul.f32 %v383, %v293
    %386 = vrot.lane.b32.xlu0 %v383, 64
    %v387 = vpop.permute.xlu0 %386
    %v389 = vmul.f32 %v383, %v387
    %391 = vrot.lane.b32.xlu0 %v389, 32
    %v392 = vpop.permute.xlu0 %391
    %v394 = vadd.f32 %v384, %v392
    %v395 = vtanh.pop %v394
    %397 = vrot.lane.b32.xlu0 %v395, 64
    %v398 = vpop.permute.xlu0 %397
    %v400 = vmul.f32 %v383, %v398
    %402 = vrot.lane.b32.xlu0 %v400, 32
    %v403 = vpop.permute.xlu0 %402
    %405 = vst.msk [vmem:[#allocation2 + $0x8] sm:$0xff] %vm202, %v403
    %v406 = vsel %vm202, %v403, 0
    %408 = vmatprep.subr.mxu0 0.0
    %409 = vmatpush1.msra.mxu0 0.0
    %410 = vmatprep.subr.mxu0 0.0
    %411 = vmatpush1.msra.mxu0 0.0
    %412 = vmatprep.subr.mxu0 0.0
    %413 = vmatpush1.msra.mxu0 0.0
    %414 = vmatprep.subr.mxu0 0.0
    %415 = vmatpush1.msra.mxu0 0.0
    %416 = vmatprep.subr.mxu0 0.0
    %417 = vmatpush1.msra.mxu0 0.0
    %418 = vmatprep.subr.mxu0 0.0
    %419 = vmatpush1.msra.mxu0 0.0
    %420 = vmatprep.subr.mxu0 0.0
    %421 = vmatpush1.msra.mxu0 0.0
    %422 = vmatprep.subr.mxu0 0.0
    %423 = vmatpush1.msra.mxu0 0.0
    %424 = vmatprep.subr.mxu0 0.0
    %425 = vmatpush1.msra.mxu0 0.0
    %426 = vmatprep.subr.mxu0 0.0
    %427 = vmatpush1.msra.mxu0 0.0
    %428 = vmatprep.subr.mxu0 0.0
    %429 = vmatpush1.msra.mxu0 0.0
    %430 = vmatprep.subr.mxu0 0.0
    %431 = vmatpush1.msra.mxu0 0.0
    %432 = vmatprep.subr.mxu0 0.0
    %433 = vmatpush1.msra.mxu0 %v64
    %434 = vmatprep.subr.mxu0 0.0
    %435 = vmatpush1.msra.mxu0 %v63
    %436 = vmatprep.subr.mxu0 0.0
    %437 = vmatpush1.msra.mxu0 %v62
    %438 = vmatprep.subr.mxu0 0.0
    %439 = vmatpush1.msra.mxu0 %v61
    %440 = vmatprep.subr.mxu0 0.0
    %441 = vmatpush2.msra.mxu0 0.0
    %442 = vmatprep.subr.mxu0 0.0
    %443 = vmatpush2.msra.mxu0 0.0
    %444 = vmatprep.subr.mxu0 0.0
    %445 = vmatpush2.msra.mxu0 0.0
    %446 = vmatprep.subr.mxu0 0.0
    %447 = vmatpush2.msra.mxu0 0.0
    %448 = vmatprep.subr.mxu0 0.0
    %449 = vmatpush2.msra.mxu0 0.0
    %450 = vmatprep.subr.mxu0 0.0
    %451 = vmatpush2.msra.mxu0 0.0
    %452 = vmatprep.subr.mxu0 0.0
    %453 = vmatpush2.msra.mxu0 0.0
    %454 = vmatprep.subr.mxu0 0.0
    %455 = vmatpush2.msra.mxu0 0.0
    %456 = vmatprep.subr.mxu0 0.0
    %457 = vmatpush2.msra.mxu0 0.0
    %458 = vmatprep.subr.mxu0 0.0
    %459 = vmatpush2.msra.mxu0 0.0
    %460 = vmatprep.subr.mxu0 0.0
    %461 = vmatpush2.msra.mxu0 0.0
    %462 = vmatprep.subr.mxu0 0.0
    %463 = vmatpush2.msra.mxu0 0.0
    %464 = vmatprep.subr.mxu0 0.0
    %465 = vmatpush2.msra.mxu0 0.0
    %466 = vmatprep.subr.mxu0 0.0
    %467 = vmatpush2.msra.mxu0 0.0
    %468 = vmatprep.subr.mxu0 0.0
    %469 = vmatpush2.msra.mxu0 0.0
    %470 = vmatprep.subr.mxu0 0.0
    %471 = vmatpush2.msra.mxu0 0.0
    %472 = vmatprep.mubr.f32.mxu0 0.0
    %473 = vmatmul.mubr.f32.gmra.mxu0 %v406
    %v474 = vpop.f32.mrf.mxu0
    %v475 = vadd.f32 0.0, %v474
    %v476 = vpop.f32.mrf.mxu0
    %477 = vdwg.mxu0
    %v478 = vadd.f32 %v174, %v475
    %v479 = vmul.f32 %v478, 0.5
    %v480 = vsel %vm46, %v478, %v479
    %v481 = vtanh.pop %v480
    %v482 = vmul.f32 %v481, 0.5
    %v483 = vadd.f32 %v482, 0.5
    %v484 = vsel %vm46, %v481, %v483
    %v485 = vmul.f32 %v484, %v394
    %487 = vrot.lane.b32.xlu0 %v484, 64
    %v488 = vpop.permute.xlu0 %487
    %v490 = vmul.f32 %v484, %v488
    %492 = vrot.lane.b32.xlu0 %v490, 32
    %v493 = vpop.permute.xlu0 %492
    %v495 = vadd.f32 %v485, %v493
    %v496 = vtanh.pop %v495
    %498 = vrot.lane.b32.xlu0 %v496, 64
    %v499 = vpop.permute.xlu0 %498
    %v501 = vmul.f32 %v484, %v499
    %503 = vrot.lane.b32.xlu0 %v501, 32
    %v504 = vpop.permute.xlu0 %503
    %506 = vst.msk [vmem:[#allocation2 + $0x10] sm:$0xff] %vm202, %v504
    %v507 = vsel %vm202, %v504, 0
    %509 = vmatprep.subr.mxu0 0.0
    %510 = vmatpush1.msra.mxu0 0.0
    %511 = vmatprep.subr.mxu0 0.0
    %512 = vmatpush1.msra.mxu0 0.0
    %513 = vmatprep.subr.mxu0 0.0
    %514 = vmatpush1.msra.mxu0 0.0
    %515 = vmatprep.subr.mxu0 0.0
    %516 = vmatpush1.msra.mxu0 0.0
    %517 = vmatprep.subr.mxu0 0.0
    %518 = vmatpush1.msra.mxu0 0.0
    %519 = vmatprep.subr.mxu0 0.0
    %520 = vmatpush1.msra.mxu0 0.0
    %521 = vmatprep.subr.mxu0 0.0
    %522 = vmatpush1.msra.mxu0 0.0
    %523 = vmatprep.subr.mxu0 0.0
    %524 = vmatpush1.msra.mxu0 0.0
    %525 = vmatprep.subr.mxu0 0.0
    %526 = vmatpush1.msra.mxu0 0.0
    %527 = vmatprep.subr.mxu0 0.0
    %528 = vmatpush1.msra.mxu0 0.0
    %529 = vmatprep.subr.mxu0 0.0
    %530 = vmatpush1.msra.mxu0 0.0
    %531 = vmatprep.subr.mxu0 0.0
    %532 = vmatpush1.msra.mxu0 0.0
    %533 = vmatprep.subr.mxu0 0.0
    %534 = vmatpush1.msra.mxu0 %v64
    %535 = vmatprep.subr.mxu0 0.0
    %536 = vmatpush1.msra.mxu0 %v63
    %537 = vmatprep.subr.mxu0 0.0
    %538 = vmatpush1.msra.mxu0 %v62
    %539 = vmatprep.subr.mxu0 0.0
    %540 = vmatpush1.msra.mxu0 %v61
    %541 = vmatprep.subr.mxu0 0.0
    %542 = vmatpush2.msra.mxu0 0.0
    %543 = vmatprep.subr.mxu0 0.0
    %544 = vmatpush2.msra.mxu0 0.0
    %545 = vmatprep.subr.mxu0 0.0
    %546 = vmatpush2.msra.mxu0 0.0
    %547 = vmatprep.subr.mxu0 0.0
    %548 = vmatpush2.msra.mxu0 0.0
    %549 = vmatprep.subr.mxu0 0.0
    %550 = vmatpush2.msra.mxu0 0.0
    %551 = vmatprep.subr.mxu0 0.0
    %552 = vmatpush2.msra.mxu0 0.0
    %553 = vmatprep.subr.mxu0 0.0
    %554 = vmatpush2.msra.mxu0 0.0
    %555 = vmatprep.subr.mxu0 0.0
    %556 = vmatpush2.msra.mxu0 0.0
    %557 = vmatprep.subr.mxu0 0.0
    %558 = vmatpush2.msra.mxu0 0.0
    %559 = vmatprep.subr.mxu0 0.0
    %560 = vmatpush2.msra.mxu0 0.0
    %561 = vmatprep.subr.mxu0 0.0
    %562 = vmatpush2.msra.mxu0 0.0
    %563 = vmatprep.subr.mxu0 0.0
    %564 = vmatpush2.msra.mxu0 0.0
    %565 = vmatprep.subr.mxu0 0.0
    %566 = vmatpush2.msra.mxu0 0.0
    %567 = vmatprep.subr.mxu0 0.0
    %568 = vmatpush2.msra.mxu0 0.0
    %569 = vmatprep.subr.mxu0 0.0
    %570 = vmatpush2.msra.mxu0 0.0
    %571 = vmatprep.subr.mxu0 0.0
    %572 = vmatpush2.msra.mxu0 0.0
    %573 = vmatprep.mubr.f32.mxu0 0.0
    %574 = vmatmul.mubr.f32.gmra.mxu0 %v507
    %v575 = vpop.f32.mrf.mxu0
    %v576 = vadd.f32 0.0, %v575
    %v577 = vpop.f32.mrf.mxu0
    %578 = vdwg.mxu0
    %v579 = vadd.f32 %v179, %v576
    %v580 = vmul.f32 %v579, 0.5
    %v581 = vsel %vm46, %v579, %v580
    %v582 = vtanh.pop %v581
    %v583 = vmul.f32 %v582, 0.5
    %v584 = vadd.f32 %v583, 0.5
    %v585 = vsel %vm46, %v582, %v584
    %v586 = vmul.f32 %v585, %v495
    %588 = vrot.lane.b32.xlu0 %v585, 64
    %v589 = vpop.permute.xlu0 %588
    %v591 = vmul.f32 %v585, %v589
    %593 = vrot.lane.b32.xlu0 %v591, 32
    %v594 = vpop.permute.xlu0 %593
    %v596 = vadd.f32 %v586, %v594
    %v597 = vtanh.pop %v596
    %599 = vrot.lane.b32.xlu0 %v597, 64
    %v600 = vpop.permute.xlu0 %599
    %v602 = vmul.f32 %v585, %v600
    %604 = vrot.lane.b32.xlu0 %v602, 32
    %v605 = vpop.permute.xlu0 %604
    %607 = vst.msk [vmem:[#allocation2 + $0x18] sm:$0xff] %vm202, %v605
    %v608 = vsel %vm202, %v605, 0
    %610 = vmatprep.subr.mxu0 0.0
    %611 = vmatpush1.msra.mxu0 0.0
    %612 = vmatprep.subr.mxu0 0.0
    %613 = vmatpush1.msra.mxu0 0.0
    %614 = vmatprep.subr.mxu0 0.0
    %615 = vmatpush1.msra.mxu0 0.0
    %616 = vmatprep.subr.mxu0 0.0
    %617 = vmatpush1.msra.mxu0 0.0
    %618 = vmatprep.subr.mxu0 0.0
    %619 = vmatpush1.msra.mxu0 0.0
    %620 = vmatprep.subr.mxu0 0.0
    %621 = vmatpush1.msra.mxu0 0.0
    %622 = vmatprep.subr.mxu0 0.0
    %623 = vmatpush1.msra.mxu0 0.0
    %624 = vmatprep.subr.mxu0 0.0
    %625 = vmatpush1.msra.mxu0 0.0
    %626 = vmatprep.subr.mxu0 0.0
    %627 = vmatpush1.msra.mxu0 0.0
    %628 = vmatprep.subr.mxu0 0.0
    %629 = vmatpush1.msra.mxu0 0.0
    %630 = vmatprep.subr.mxu0 0.0
    %631 = vmatpush1.msra.mxu0 0.0
    %632 = vmatprep.subr.mxu0 0.0
    %633 = vmatpush1.msra.mxu0 0.0
    %634 = vmatprep.subr.mxu0 0.0
    %635 = vmatpush1.msra.mxu0 %v64
    %636 = vmatprep.subr.mxu0 0.0
    %637 = vmatpush1.msra.mxu0 %v63
    %638 = vmatprep.subr.mxu0 0.0
    %639 = vmatpush1.msra.mxu0 %v62
    %640 = vmatprep.subr.mxu0 0.0
    %641 = vmatpush1.msra.mxu0 %v61
    %642 = vmatprep.subr.mxu0 0.0
    %643 = vmatpush2.msra.mxu0 0.0
    %644 = vmatprep.subr.mxu0 0.0
    %645 = vmatpush2.msra.mxu0 0.0
    %646 = vmatprep.subr.mxu0 0.0
    %647 = vmatpush2.msra.mxu0 0.0
    %648 = vmatprep.subr.mxu0 0.0
    %649 = vmatpush2.msra.mxu0 0.0
    %650 = vmatprep.subr.mxu0 0.0
    %651 = vmatpush2.msra.mxu0 0.0
    %652 = vmatprep.subr.mxu0 0.0
    %653 = vmatpush2.msra.mxu0 0.0
    %654 = vmatprep.subr.mxu0 0.0
    %655 = vmatpush2.msra.mxu0 0.0
    %656 = vmatprep.subr.mxu0 0.0
    %657 = vmatpush2.msra.mxu0 0.0
    %658 = vmatprep.subr.mxu0 0.0
    %659 = vmatpush2.msra.mxu0 0.0
    %660 = vmatprep.subr.mxu0 0.0
    %661 = vmatpush2.msra.mxu0 0.0
    %662 = vmatprep.subr.mxu0 0.0
    %663 = vmatpush2.msra.mxu0 0.0
    %664 = vmatprep.subr.mxu0 0.0
    %665 = vmatpush2.msra.mxu0 0.0
    %666 = vmatprep.subr.mxu0 0.0
    %667 = vmatpush2.msra.mxu0 0.0
    %668 = vmatprep.subr.mxu0 0.0
    %669 = vmatpush2.msra.mxu0 0.0
    %670 = vmatprep.subr.mxu0 0.0
    %671 = vmatpush2.msra.mxu0 0.0
    %672 = vmatprep.subr.mxu0 0.0
    %673 = vmatpush2.msra.mxu0 0.0
    %674 = vmatprep.mubr.f32.mxu0 0.0
    %675 = vmatmul.mubr.f32.gmra.mxu0 %v608
    %v676 = vpop.f32.mrf.mxu0
    %v677 = vadd.f32 0.0, %v676
    %v678 = vpop.f32.mrf.mxu0
    %679 = vdwg.mxu0
    %v680 = vadd.f32 %v184, %v677
    %v681 = vmul.f32 %v680, 0.5
    %v682 = vsel %vm46, %v680, %v681
    %v683 = vtanh.pop %v682
    %v684 = vmul.f32 %v683, 0.5
    %v685 = vadd.f32 %v684, 0.5
    %v686 = vsel %vm46, %v683, %v685
    %v687 = vmul.f32 %v686, %v596
    %689 = vrot.lane.b32.xlu0 %v686, 64
    %v690 = vpop.permute.xlu0 %689
    %v692 = vmul.f32 %v686, %v690
    %694 = vrot.lane.b32.xlu0 %v692, 32
    %v695 = vpop.permute.xlu0 %694
    %v697 = vadd.f32 %v687, %v695
    %v698 = vtanh.pop %v697
    %700 = vrot.lane.b32.xlu0 %v698, 64
    %v701 = vpop.permute.xlu0 %700
    %v703 = vmul.f32 %v686, %v701
    %705 = vrot.lane.b32.xlu0 %v703, 32
    %v706 = vpop.permute.xlu0 %705
    %708 = vst.msk [vmem:[#allocation2 + $0x20] sm:$0xff] %vm202, %v706
    %v709 = vsel %vm202, %v706, 0
    %711 = vmatprep.subr.mxu0 0.0
    %712 = vmatpush1.msra.mxu0 0.0
    %713 = vmatprep.subr.mxu0 0.0
    %714 = vmatpush1.msra.mxu0 0.0
    %715 = vmatprep.subr.mxu0 0.0
    %716 = vmatpush1.msra.mxu0 0.0
    %717 = vmatprep.subr.mxu0 0.0
    %718 = vmatpush1.msra.mxu0 0.0
    %719 = vmatprep.subr.mxu0 0.0
    %720 = vmatpush1.msra.mxu0 0.0
    %721 = vmatprep.subr.mxu0 0.0
    %722 = vmatpush1.msra.mxu0 0.0
    %723 = vmatprep.subr.mxu0 0.0
    %724 = vmatpush1.msra.mxu0 0.0
    %725 = vmatprep.subr.mxu0 0.0
    %726 = vmatpush1.msra.mxu0 0.0
    %727 = vmatprep.subr.mxu0 0.0
    %728 = vmatpush1.msra.mxu0 0.0
    %729 = vmatprep.subr.mxu0 0.0
    %730 = vmatpush1.msra.mxu0 0.0
    %731 = vmatprep.subr.mxu0 0.0
    %732 = vmatpush1.msra.mxu0 0.0
    %733 = vmatprep.subr.mxu0 0.0
    %734 = vmatpush1.msra.mxu0 0.0
    %735 = vmatprep.subr.mxu0 0.0
    %736 = vmatpush1.msra.mxu0 %v64
    %737 = vmatprep.subr.mxu0 0.0
    %738 = vmatpush1.msra.mxu0 %v63
    %739 = vmatprep.subr.mxu0 0.0
    %740 = vmatpush1.msra.mxu0 %v62
    %741 = vmatprep.subr.mxu0 0.0
    %742 = vmatpush1.msra.mxu0 %v61
    %743 = vmatprep.subr.mxu0 0.0
    %744 = vmatpush2.msra.mxu0 0.0
    %745 = vmatprep.subr.mxu0 0.0
    %746 = vmatpush2.msra.mxu0 0.0
    %747 = vmatprep.subr.mxu0 0.0
    %748 = vmatpush2.msra.mxu0 0.0
    %749 = vmatprep.subr.mxu0 0.0
    %750 = vmatpush2.msra.mxu0 0.0
    %751 = vmatprep.subr.mxu0 0.0
    %752 = vmatpush2.msra.mxu0 0.0
    %753 = vmatprep.subr.mxu0 0.0
    %754 = vmatpush2.msra.mxu0 0.0
    %755 = vmatprep.subr.mxu0 0.0
    %756 = vmatpush2.msra.mxu0 0.0
    %757 = vmatprep.subr.mxu0 0.0
    %758 = vmatpush2.msra.mxu0 0.0
    %759 = vmatprep.subr.mxu0 0.0
    %760 = vmatpush2.msra.mxu0 0.0
    %761 = vmatprep.subr.mxu0 0.0
    %762 = vmatpush2.msra.mxu0 0.0
    %763 = vmatprep.subr.mxu0 0.0
    %764 = vmatpush2.msra.mxu0 0.0
    %765 = vmatprep.subr.mxu0 0.0
    %766 = vmatpush2.msra.mxu0 0.0
    %767 = vmatprep.subr.mxu0 0.0
    %768 = vmatpush2.msra.mxu0 0.0
    %769 = vmatprep.subr.mxu0 0.0
    %770 = vmatpush2.msra.mxu0 0.0
    %771 = vmatprep.subr.mxu0 0.0
    %772 = vmatpush2.msra.mxu0 0.0
    %773 = vmatprep.subr.mxu0 0.0
    %774 = vmatpush2.msra.mxu0 0.0
    %775 = vmatprep.mubr.f32.mxu0 0.0
    %776 = vmatmul.mubr.f32.gmra.mxu0 %v709
    %v777 = vpop.f32.mrf.mxu0
    %v778 = vadd.f32 0.0, %v777
    %v779 = vpop.f32.mrf.mxu0
    %780 = vdwg.mxu0
    %v781 = vadd.f32 %v189, %v778
    %v782 = vmul.f32 %v781, 0.5
    %v783 = vsel %vm46, %v781, %v782
    %v784 = vtanh.pop %v783
    %v785 = vmul.f32 %v784, 0.5
    %v786 = vadd.f32 %v785, 0.5
    %v787 = vsel %vm46, %v784, %v786
    %v788 = vmul.f32 %v787, %v697
    %790 = vrot.lane.b32.xlu0 %v787, 64
    %v791 = vpop.permute.xlu0 %790
    %v793 = vmul.f32 %v787, %v791
    %795 = vrot.lane.b32.xlu0 %v793, 32
    %v796 = vpop.permute.xlu0 %795
    %v798 = vadd.f32 %v788, %v796
    %v799 = vtanh.pop %v798
    %801 = vrot.lane.b32.xlu0 %v799, 64
    %v802 = vpop.permute.xlu0 %801
    %v804 = vmul.f32 %v787, %v802
    %806 = vrot.lane.b32.xlu0 %v804, 32
    %v807 = vpop.permute.xlu0 %806
    %809 = vst.msk [vmem:[#allocation2 + $0x28] sm:$0xff] %vm202, %v807
    %v810 = vsel %vm202, %v807, 0
    %812 = vmatprep.subr.mxu0 0.0
    %813 = vmatpush1.msra.mxu0 0.0
    %814 = vmatprep.subr.mxu0 0.0
    %815 = vmatpush1.msra.mxu0 0.0
    %816 = vmatprep.subr.mxu0 0.0
    %817 = vmatpush1.msra.mxu0 0.0
    %818 = vmatprep.subr.mxu0 0.0
    %819 = vmatpush1.msra.mxu0 0.0
    %820 = vmatprep.subr.mxu0 0.0
    %821 = vmatpush1.msra.mxu0 0.0
    %822 = vmatprep.subr.mxu0 0.0
    %823 = vmatpush1.msra.mxu0 0.0
    %824 = vmatprep.subr.mxu0 0.0
    %825 = vmatpush1.msra.mxu0 0.0
    %826 = vmatprep.subr.mxu0 0.0
    %827 = vmatpush1.msra.mxu0 0.0
    %828 = vmatprep.subr.mxu0 0.0
    %829 = vmatpush1.msra.mxu0 0.0
    %830 = vmatprep.subr.mxu0 0.0
    %831 = vmatpush1.msra.mxu0 0.0
    %832 = vmatprep.subr.mxu0 0.0
    %833 = vmatpush1.msra.mxu0 0.0
    %834 = vmatprep.subr.mxu0 0.0
    %835 = vmatpush1.msra.mxu0 0.0
    %836 = vmatprep.subr.mxu0 0.0
    %837 = vmatpush1.msra.mxu0 %v64
    %838 = vmatprep.subr.mxu0 0.0
    %839 = vmatpush1.msra.mxu0 %v63
    %840 = vmatprep.subr.mxu0 0.0
    %841 = vmatpush1.msra.mxu0 %v62
    %842 = vmatprep.subr.mxu0 0.0
    %843 = vmatpush1.msra.mxu0 %v61
    %844 = vmatprep.subr.mxu0 0.0
    %845 = vmatpush2.msra.mxu0 0.0
    %846 = vmatprep.subr.mxu0 0.0
    %847 = vmatpush2.msra.mxu0 0.0
    %848 = vmatprep.subr.mxu0 0.0
    %849 = vmatpush2.msra.mxu0 0.0
    %850 = vmatprep.subr.mxu0 0.0
    %851 = vmatpush2.msra.mxu0 0.0
    %852 = vmatprep.subr.mxu0 0.0
    %853 = vmatpush2.msra.mxu0 0.0
    %854 = vmatprep.subr.mxu0 0.0
    %855 = vmatpush2.msra.mxu0 0.0
    %856 = vmatprep.subr.mxu0 0.0
    %857 = vmatpush2.msra.mxu0 0.0
    %858 = vmatprep.subr.mxu0 0.0
    %859 = vmatpush2.msra.mxu0 0.0
    %860 = vmatprep.subr.mxu0 0.0
    %861 = vmatpush2.msra.mxu0 0.0
    %862 = vmatprep.subr.mxu0 0.0
    %863 = vmatpush2.msra.mxu0 0.0
    %864 = vmatprep.subr.mxu0 0.0
    %865 = vmatpush2.msra.mxu0 0.0
    %866 = vmatprep.subr.mxu0 0.0
    %867 = vmatpush2.msra.mxu0 0.0
    %868 = vmatprep.subr.mxu0 0.0
    %869 = vmatpush2.msra.mxu0 0.0
    %870 = vmatprep.subr.mxu0 0.0
    %871 = vmatpush2.msra.mxu0 0.0
    %872 = vmatprep.subr.mxu0 0.0
    %873 = vmatpush2.msra.mxu0 0.0
    %874 = vmatprep.subr.mxu0 0.0
    %875 = vmatpush2.msra.mxu0 0.0
    %876 = vmatprep.mubr.f32.mxu0 0.0
    %877 = vmatmul.mubr.f32.gmra.mxu0 %v810
    %v878 = vpop.f32.mrf.mxu0
    %v879 = vadd.f32 0.0, %v878
    %v880 = vpop.f32.mrf.mxu0
    %881 = vdwg.mxu0
    %v882 = vadd.f32 %v194, %v879
    %v883 = vmul.f32 %v882, 0.5
    %v884 = vsel %vm46, %v882, %v883
    %v885 = vtanh.pop %v884
    %v886 = vmul.f32 %v885, 0.5
    %v887 = vadd.f32 %v886, 0.5
    %v888 = vsel %vm46, %v885, %v887
    %v889 = vmul.f32 %v888, %v798
    %891 = vrot.lane.b32.xlu0 %v888, 64
    %v892 = vpop.permute.xlu0 %891
    %v894 = vmul.f32 %v888, %v892
    %896 = vrot.lane.b32.xlu0 %v894, 32
    %v897 = vpop.permute.xlu0 %896
    %v899 = vadd.f32 %v889, %v897
    %v900 = vtanh.pop %v899
    %902 = vrot.lane.b32.xlu0 %v900, 64
    %v903 = vpop.permute.xlu0 %902
    %v905 = vmul.f32 %v888, %v903
    %907 = vrot.lane.b32.xlu0 %v905, 32
    %v908 = vpop.permute.xlu0 %907
    %910 = vst.msk [vmem:[#allocation2 + $0x30] sm:$0xff] %vm202, %v908
    %v911 = vsel %vm202, %v908, 0
    %913 = vmatprep.subr.mxu0 0.0
    %914 = vmatpush1.msra.mxu0 0.0
    %915 = vmatprep.subr.mxu0 0.0
    %916 = vmatpush1.msra.mxu0 0.0
    %917 = vmatprep.subr.mxu0 0.0
    %918 = vmatpush1.msra.mxu0 0.0
    %919 = vmatprep.subr.mxu0 0.0
    %920 = vmatpush1.msra.mxu0 0.0
    %921 = vmatprep.subr.mxu0 0.0
    %922 = vmatpush1.msra.mxu0 0.0
    %923 = vmatprep.subr.mxu0 0.0
    %924 = vmatpush1.msra.mxu0 0.0
    %925 = vmatprep.subr.mxu0 0.0
    %926 = vmatpush1.msra.mxu0 0.0
    %927 = vmatprep.subr.mxu0 0.0
    %928 = vmatpush1.msra.mxu0 0.0
    %929 = vmatprep.subr.mxu0 0.0
    %930 = vmatpush1.msra.mxu0 0.0
    %931 = vmatprep.subr.mxu0 0.0
    %932 = vmatpush1.msra.mxu0 0.0
    %933 = vmatprep.subr.mxu0 0.0
    %934 = vmatpush1.msra.mxu0 0.0
    %935 = vmatprep.subr.mxu0 0.0
    %936 = vmatpush1.msra.mxu0 0.0
    %937 = vmatprep.subr.mxu0 0.0
    %938 = vmatpush1.msra.mxu0 %v64
    %939 = vmatprep.subr.mxu0 0.0
    %940 = vmatpush1.msra.mxu0 %v63
    %941 = vmatprep.subr.mxu0 0.0
    %942 = vmatpush1.msra.mxu0 %v62
    %943 = vmatprep.subr.mxu0 0.0
    %944 = vmatpush1.msra.mxu0 %v61
    %945 = vmatprep.subr.mxu0 0.0
    %946 = vmatpush2.msra.mxu0 0.0
    %947 = vmatprep.subr.mxu0 0.0
    %948 = vmatpush2.msra.mxu0 0.0
    %949 = vmatprep.subr.mxu0 0.0
    %950 = vmatpush2.msra.mxu0 0.0
    %951 = vmatprep.subr.mxu0 0.0
    %952 = vmatpush2.msra.mxu0 0.0
    %953 = vmatprep.subr.mxu0 0.0
    %954 = vmatpush2.msra.mxu0 0.0
    %955 = vmatprep.subr.mxu0 0.0
    %956 = vmatpush2.msra.mxu0 0.0
    %957 = vmatprep.subr.mxu0 0.0
    %958 = vmatpush2.msra.mxu0 0.0
    %959 = vmatprep.subr.mxu0 0.0
    %960 = vmatpush2.msra.mxu0 0.0
    %961 = vmatprep.subr.mxu0 0.0
    %962 = vmatpush2.msra.mxu0 0.0
    %963 = vmatprep.subr.mxu0 0.0
    %964 = vmatpush2.msra.mxu0 0.0
    %965 = vmatprep.subr.mxu0 0.0
    %966 = vmatpush2.msra.mxu0 0.0
    %967 = vmatprep.subr.mxu0 0.0
    %968 = vmatpush2.msra.mxu0 0.0
    %969 = vmatprep.subr.mxu0 0.0
    %970 = vmatpush2.msra.mxu0 0.0
    %971 = vmatprep.subr.mxu0 0.0
    %972 = vmatpush2.msra.mxu0 0.0
    %973 = vmatprep.subr.mxu0 0.0
    %974 = vmatpush2.msra.mxu0 0.0
    %975 = vmatprep.subr.mxu0 0.0
    %976 = vmatpush2.msra.mxu0 0.0
    %977 = vmatprep.mubr.f32.mxu0 0.0
    %978 = vmatmul.mubr.f32.gmra.mxu0 %v911
    %v979 = vpop.f32.mrf.mxu0
    %v980 = vadd.f32 0.0, %v979
    %v981 = vpop.f32.mrf.mxu0
    %982 = vdwg.mxu0
    %v983 = vadd.f32 %v199, %v980
    %v984 = vmul.f32 %v983, 0.5
    %v985 = vsel %vm46, %v983, %v984
    %v986 = vtanh.pop %v985
    %v987 = vmul.f32 %v986, 0.5
    %v988 = vadd.f32 %v987, 0.5
    %v989 = vsel %vm46, %v986, %v988
    %v990 = vmul.f32 %v989, %v899
    %992 = vrot.lane.b32.xlu0 %v989, 64
    %v993 = vpop.permute.xlu0 %992
    %v995 = vmul.f32 %v989, %v993
    %997 = vrot.lane.b32.xlu0 %v995, 32
    %v998 = vpop.permute.xlu0 %997
    %v1000 = vadd.f32 %v990, %v998
    %v1001 = vtanh.pop %v1000
    %1003 = vrot.lane.b32.xlu0 %v1001, 64
    %v1004 = vpop.permute.xlu0 %1003
    %v1006 = vmul.f32 %v989, %v1004
    %1008 = vrot.lane.b32.xlu0 %v1006, 32
    %v1009 = vpop.permute.xlu0 %1008
    %1011 = vst.msk [vmem:[#allocation2 + $0x38] sm:$0xff] %vm202, %v1009
    %1012 = vst.msk [vmem:[%s7] sm:$0xff] %vm202, %v1009
    %1014 = vrot.lane.b32.xlu0 %v1000, 96
    %v1015 = vpop.permute.xlu0 %1014
    %1017 = vst.msk [vmem:[%s8] sm:$0xff] %vm202, %v1015
    %v1018 = vld [vmem:[#allocation2] sm:$0xff]
    %v1019 = vld [vmem:[#allocation2 + $0x8] sm:$0xff]
    %v1020 = vld [vmem:[#allocation2 + $0x10] sm:$0xff]
    %v1021 = vld [vmem:[#allocation2 + $0x18] sm:$0xff]
    %v1022 = vld [vmem:[#allocation2 + $0x20] sm:$0xff]
    %v1023 = vld [vmem:[#allocation2 + $0x28] sm:$0xff]
    %v1024 = vld [vmem:[#allocation2 + $0x30] sm:$0xff]
    %v1025 = vld [vmem:[#allocation2 + $0x38] sm:$0xff]
    %v1026 = vld [vmem:[%s4] sm:$0xff]
    %v1027 = vld [vmem:[%s4 + $0x8] sm:$0xff]
    %v1028 = vld [vmem:[%s4 + $0x10] sm:$0xff]
    %v1029 = vld [vmem:[%s4 + $0x18] sm:$0xff]
    %v1030 = vld [vmem:[#allocation3] sm:$0xff]
    %v1031 = vld [vmem:[#allocation3 + $0x8] sm:$0xff]
    %v1032 = vld [vmem:[#allocation3 + $0x10] sm:$0xff]
    %v1033 = vld [vmem:[#allocation3 + $0x18] sm:$0xff]
    %v1034 = vld [vmem:[%s6] sm:$0x1]
    %v1036 = vlaneseq
    %v1037 = vshrl.u32 %v1036, 7
    %v1038 = vsub.s32 0, %v1037
    %v1039 = vrot.slane %v1034, %v1038
    %v1042 = vsel %vm202, %v1018, 0
    %v1045 = vsel %vm202, %v1019, 0
    %v1048 = vsel %vm202, %v1020, 0
    %v1051 = vsel %vm202, %v1021, 0
    %v1054 = vsel %vm202, %v1022, 0
    %v1057 = vsel %vm202, %v1023, 0
    %v1060 = vsel %vm202, %v1024, 0
    %v1063 = vsel %vm202, %v1025, 0
    %1065 = vmatprep.subr.mxu0 0.0
    %1066 = vmatpush1.msra.mxu0 0.0
    %1067 = vmatprep.subr.mxu0 0.0
    %1068 = vmatpush1.msra.mxu0 0.0
    %1069 = vmatprep.subr.mxu0 0.0
    %1070 = vmatpush1.msra.mxu0 0.0
    %1071 = vmatprep.subr.mxu0 0.0
    %1072 = vmatpush1.msra.mxu0 0.0
    %1073 = vmatprep.subr.mxu0 0.0
    %1074 = vmatpush1.msra.mxu0 0.0
    %1075 = vmatprep.subr.mxu0 0.0
    %1076 = vmatpush1.msra.mxu0 0.0
    %1077 = vmatprep.subr.mxu0 0.0
    %1078 = vmatpush1.msra.mxu0 0.0
    %1079 = vmatprep.subr.mxu0 0.0
    %1080 = vmatpush1.msra.mxu0 0.0
    %1081 = vmatprep.subr.mxu0 0.0
    %1082 = vmatpush1.msra.mxu0 0.0
    %1083 = vmatprep.subr.mxu0 0.0
    %1084 = vmatpush1.msra.mxu0 0.0
    %1085 = vmatprep.subr.mxu0 0.0
    %1086 = vmatpush1.msra.mxu0 0.0
    %1087 = vmatprep.subr.mxu0 0.0
    %1088 = vmatpush1.msra.mxu0 0.0
    %1089 = vmatprep.subr.mxu0 0.0
    %1090 = vmatpush1.msra.mxu0 %v1029
    %1091 = vmatprep.subr.mxu0 0.0
    %1092 = vmatpush1.msra.mxu0 %v1028
    %1093 = vmatprep.subr.mxu0 0.0
    %1094 = vmatpush1.msra.mxu0 %v1027
    %1095 = vmatprep.subr.mxu0 0.0
    %1096 = vmatpush1.msra.mxu0 %v1026
    %1097 = vmatprep.subr.mxu0 0.0
    %1098 = vmatpush2.msra.mxu0 0.0
    %1099 = vmatprep.subr.mxu0 0.0
    %1100 = vmatpush2.msra.mxu0 0.0
    %1101 = vmatprep.subr.mxu0 0.0
    %1102 = vmatpush2.msra.mxu0 0.0
    %1103 = vmatprep.subr.mxu0 0.0
    %1104 = vmatpush2.msra.mxu0 0.0
    %1105 = vmatprep.subr.mxu0 0.0
    %1106 = vmatpush2.msra.mxu0 0.0
    %1107 = vmatprep.subr.mxu0 0.0
    %1108 = vmatpush2.msra.mxu0 0.0
    %1109 = vmatprep.subr.mxu0 0.0
    %1110 = vmatpush2.msra.mxu0 0.0
    %1111 = vmatprep.subr.mxu0 0.0
    %1112 = vmatpush2.msra.mxu0 0.0
    %1113 = vmatprep.subr.mxu0 0.0
    %1114 = vmatpush2.msra.mxu0 0.0
    %1115 = vmatprep.subr.mxu0 0.0
    %1116 = vmatpush2.msra.mxu0 0.0
    %1117 = vmatprep.subr.mxu0 0.0
    %1118 = vmatpush2.msra.mxu0 0.0
    %1119 = vmatprep.subr.mxu0 0.0
    %1120 = vmatpush2.msra.mxu0 0.0
    %1121 = vmatprep.subr.mxu0 0.0
    %1122 = vmatpush2.msra.mxu0 0.0
    %1123 = vmatprep.subr.mxu0 0.0
    %1124 = vmatpush2.msra.mxu0 0.0
    %1125 = vmatprep.subr.mxu0 0.0
    %1126 = vmatpush2.msra.mxu0 0.0
    %1127 = vmatprep.subr.mxu0 0.0
    %1128 = vmatpush2.msra.mxu0 0.0
    %1129 = vmatprep.mubr.f32.mxu0 0.0
    %1130 = vmatmul.mubr.f32.gmra.mxu0 %v1042
    %v1131 = vpop.f32.mrf.mxu0
    %v1132 = vadd.f32 %v1039, %v1131
    %v1133 = vpop.f32.mrf.mxu0
    %1134 = vmatprep.mubr.f32.mxu0 0.0
    %1135 = vmatmul.mubr.f32.gmra.mxu0 %v1045
    %v1136 = vpop.f32.mrf.mxu0
    %v1137 = vadd.f32 %v1039, %v1136
    %v1138 = vpop.f32.mrf.mxu0
    %1139 = vmatprep.mubr.f32.mxu0 0.0
    %1140 = vmatmul.mubr.f32.gmra.mxu0 %v1048
    %v1141 = vpop.f32.mrf.mxu0
    %v1142 = vadd.f32 %v1039, %v1141
    %v1143 = vpop.f32.mrf.mxu0
    %1144 = vmatprep.mubr.f32.mxu0 0.0
    %1145 = vmatmul.mubr.f32.gmra.mxu0 %v1051
    %v1146 = vpop.f32.mrf.mxu0
    %v1147 = vadd.f32 %v1039, %v1146
    %v1148 = vpop.f32.mrf.mxu0
    %1149 = vmatprep.mubr.f32.mxu0 0.0
    %1150 = vmatmul.mubr.f32.gmra.mxu0 %v1054
    %v1151 = vpop.f32.mrf.mxu0
    %v1152 = vadd.f32 %v1039, %v1151
    %v1153 = vpop.f32.mrf.mxu0
    %1154 = vmatprep.mubr.f32.mxu0 0.0
    %1155 = vmatmul.mubr.f32.gmra.mxu0 %v1057
    %v1156 = vpop.f32.mrf.mxu0
    %v1157 = vadd.f32 %v1039, %v1156
    %v1158 = vpop.f32.mrf.mxu0
    %1159 = vmatprep.mubr.f32.mxu0 0.0
    %1160 = vmatmul.mubr.f32.gmra.mxu0 %v1060
    %v1161 = vpop.f32.mrf.mxu0
    %v1162 = vadd.f32 %v1039, %v1161
    %v1163 = vpop.f32.mrf.mxu0
    %1164 = vmatprep.mubr.f32.mxu0 0.0
    %1165 = vmatmul.mubr.f32.gmra.mxu0 %v1063
    %v1166 = vpop.f32.mrf.mxu0
    %v1167 = vadd.f32 %v1039, %v1166
    %v1168 = vpop.f32.mrf.mxu0
    %1169 = vdwg.mxu0
    %1170 = vmatprep.subr.mxu0 0.0
    %1171 = vmatpush1.msra.mxu0 0.0
    %1172 = vmatprep.subr.mxu0 0.0
    %1173 = vmatpush1.msra.mxu0 0.0
    %1174 = vmatprep.subr.mxu0 0.0
    %1175 = vmatpush1.msra.mxu0 0.0
    %1176 = vmatprep.subr.mxu0 0.0
    %1177 = vmatpush1.msra.mxu0 0.0
    %1178 = vmatprep.subr.mxu0 0.0
    %1179 = vmatpush1.msra.mxu0 0.0
    %1180 = vmatprep.subr.mxu0 0.0
    %1181 = vmatpush1.msra.mxu0 0.0
    %1182 = vmatprep.subr.mxu0 0.0
    %1183 = vmatpush1.msra.mxu0 0.0
    %1184 = vmatprep.subr.mxu0 0.0
    %1185 = vmatpush1.msra.mxu0 0.0
    %1186 = vmatprep.subr.mxu0 0.0
    %1187 = vmatpush1.msra.mxu0 0.0
    %1188 = vmatprep.subr.mxu0 0.0
    %1189 = vmatpush1.msra.mxu0 0.0
    %1190 = vmatprep.subr.mxu0 0.0
    %1191 = vmatpush1.msra.mxu0 0.0
    %1192 = vmatprep.subr.mxu0 0.0
    %1193 = vmatpush1.msra.mxu0 0.0
    %1194 = vmatprep.subr.mxu0 0.0
    %1195 = vmatpush1.msra.mxu0 %v1033
    %1196 = vmatprep.subr.mxu0 0.0
    %1197 = vmatpush1.msra.mxu0 %v1032
    %1198 = vmatprep.subr.mxu0 0.0
    %1199 = vmatpush1.msra.mxu0 %v1031
    %1200 = vmatprep.subr.mxu0 0.0
    %1201 = vmatpush1.msra.mxu0 %v1030
    %1202 = vmatprep.subr.mxu0 0.0
    %1203 = vmatpush2.msra.mxu0 0.0
    %1204 = vmatprep.subr.mxu0 0.0
    %1205 = vmatpush2.msra.mxu0 0.0
    %1206 = vmatprep.subr.mxu0 0.0
    %1207 = vmatpush2.msra.mxu0 0.0
    %1208 = vmatprep.subr.mxu0 0.0
    %1209 = vmatpush2.msra.mxu0 0.0
    %1210 = vmatprep.subr.mxu0 0.0
    %1211 = vmatpush2.msra.mxu0 0.0
    %1212 = vmatprep.subr.mxu0 0.0
    %1213 = vmatpush2.msra.mxu0 0.0
    %1214 = vmatprep.subr.mxu0 0.0
    %1215 = vmatpush2.msra.mxu0 0.0
    %1216 = vmatprep.subr.mxu0 0.0
    %1217 = vmatpush2.msra.mxu0 0.0
    %1218 = vmatprep.subr.mxu0 0.0
    %1219 = vmatpush2.msra.mxu0 0.0
    %1220 = vmatprep.subr.mxu0 0.0
    %1221 = vmatpush2.msra.mxu0 0.0
    %1222 = vmatprep.subr.mxu0 0.0
    %1223 = vmatpush2.msra.mxu0 0.0
    %1224 = vmatprep.subr.mxu0 0.0
    %1225 = vmatpush2.msra.mxu0 0.0
    %1226 = vmatprep.subr.mxu0 0.0
    %1227 = vmatpush2.msra.mxu0 0.0
    %1228 = vmatprep.subr.mxu0 0.0
    %1229 = vmatpush2.msra.mxu0 0.0
    %1230 = vmatprep.subr.mxu0 0.0
    %1231 = vmatpush2.msra.mxu0 0.0
    %1232 = vmatprep.subr.mxu0 0.0
    %1233 = vmatpush2.msra.mxu0 0.0
    %1234 = vmatprep.mubr.f32.mxu0 0.0
    %1235 = vmatmul.mubr.f32.gmra.mxu0 %v204
    %v1236 = vpop.f32.mrf.mxu0
    %v1237 = vadd.f32 0.0, %v1236
    %v1238 = vpop.f32.mrf.mxu0
    %1239 = vdwg.mxu0
    %v1240 = vadd.f32 %v1132, %v1237
    %v1241 = vmul.f32 %v1240, 0.5
    %v1242 = vsel %vm46, %v1240, %v1241
    %v1243 = vtanh.pop %v1242
    %v1244 = vmul.f32 %v1243, 0.5
    %v1245 = vadd.f32 %v1244, 0.5
    %v1246 = vsel %vm46, %v1243, %v1245
    %v1247 = vmul.f32 %v1246, 0.0
    %1249 = vrot.lane.b32.xlu0 %v1246, 64
    %v1250 = vpop.permute.xlu0 %1249
    %v1252 = vmul.f32 %v1246, %v1250
    %1254 = vrot.lane.b32.xlu0 %v1252, 32
    %v1255 = vpop.permute.xlu0 %1254
    %v1257 = vadd.f32 %v1247, %v1255
    %v1258 = vtanh.pop %v1257
    %1260 = vrot.lane.b32.xlu0 %v1258, 64
    %v1261 = vpop.permute.xlu0 %1260
    %v1263 = vmul.f32 %v1246, %v1261
    %1265 = vrot.lane.b32.xlu0 %v1263, 32
    %v1266 = vpop.permute.xlu0 %1265
    %v1267 = vsel %vm202, %v1266, 0
    %1269 = vmatprep.subr.mxu0 0.0
    %1270 = vmatpush1.msra.mxu0 0.0
    %1271 = vmatprep.subr.mxu0 0.0
    %1272 = vmatpush1.msra.mxu0 0.0
    %1273 = vmatprep.subr.mxu0 0.0
    %1274 = vmatpush1.msra.mxu0 0.0
    %1275 = vmatprep.subr.mxu0 0.0
    %1276 = vmatpush1.msra.mxu0 0.0
    %1277 = vmatprep.subr.mxu0 0.0
    %1278 = vmatpush1.msra.mxu0 0.0
    %1279 = vmatprep.subr.mxu0 0.0
    %1280 = vmatpush1.msra.mxu0 0.0
    %1281 = vmatprep.subr.mxu0 0.0
    %1282 = vmatpush1.msra.mxu0 0.0
    %1283 = vmatprep.subr.mxu0 0.0
    %1284 = vmatpush1.msra.mxu0 0.0
    %1285 = vmatprep.subr.mxu0 0.0
    %1286 = vmatpush1.msra.mxu0 0.0
    %1287 = vmatprep.subr.mxu0 0.0
    %1288 = vmatpush1.msra.mxu0 0.0
    %1289 = vmatprep.subr.mxu0 0.0
    %1290 = vmatpush1.msra.mxu0 0.0
    %1291 = vmatprep.subr.mxu0 0.0
    %1292 = vmatpush1.msra.mxu0 0.0
    %1293 = vmatprep.subr.mxu0 0.0
    %1294 = vmatpush1.msra.mxu0 %v1033
    %1295 = vmatprep.subr.mxu0 0.0
    %1296 = vmatpush1.msra.mxu0 %v1032
    %1297 = vmatprep.subr.mxu0 0.0
    %1298 = vmatpush1.msra.mxu0 %v1031
    %1299 = vmatprep.subr.mxu0 0.0
    %1300 = vmatpush1.msra.mxu0 %v1030
    %1301 = vmatprep.subr.mxu0 0.0
    %1302 = vmatpush2.msra.mxu0 0.0
    %1303 = vmatprep.subr.mxu0 0.0
    %1304 = vmatpush2.msra.mxu0 0.0
    %1305 = vmatprep.subr.mxu0 0.0
    %1306 = vmatpush2.msra.mxu0 0.0
    %1307 = vmatprep.subr.mxu0 0.0
    %1308 = vmatpush2.msra.mxu0 0.0
    %1309 = vmatprep.subr.mxu0 0.0
    %1310 = vmatpush2.msra.mxu0 0.0
    %1311 = vmatprep.subr.mxu0 0.0
    %1312 = vmatpush2.msra.mxu0 0.0
    %1313 = vmatprep.subr.mxu0 0.0
    %1314 = vmatpush2.msra.mxu0 0.0
    %1315 = vmatprep.subr.mxu0 0.0
    %1316 = vmatpush2.msra.mxu0 0.0
    %1317 = vmatprep.subr.mxu0 0.0
    %1318 = vmatpush2.msra.mxu0 0.0
    %1319 = vmatprep.subr.mxu0 0.0
    %1320 = vmatpush2.msra.mxu0 0.0
    %1321 = vmatprep.subr.mxu0 0.0
    %1322 = vmatpush2.msra.mxu0 0.0
    %1323 = vmatprep.subr.mxu0 0.0
    %1324 = vmatpush2.msra.mxu0 0.0
    %1325 = vmatprep.subr.mxu0 0.0
    %1326 = vmatpush2.msra.mxu0 0.0
    %1327 = vmatprep.subr.mxu0 0.0
    %1328 = vmatpush2.msra.mxu0 0.0
    %1329 = vmatprep.subr.mxu0 0.0
    %1330 = vmatpush2.msra.mxu0 0.0
    %1331 = vmatprep.subr.mxu0 0.0
    %1332 = vmatpush2.msra.mxu0 0.0
    %1333 = vmatprep.mubr.f32.mxu0 0.0
    %1334 = vmatmul.mubr.f32.gmra.mxu0 %v1267
    %v1335 = vpop.f32.mrf.mxu0
    %v1336 = vadd.f32 0.0, %v1335
    %v1337 = vpop.f32.mrf.mxu0
    %1338 = vdwg.mxu0
    %v1339 = vadd.f32 %v1137, %v1336
    %v1340 = vmul.f32 %v1339, 0.5
    %v1341 = vsel %vm46, %v1339, %v1340
    %v1342 = vtanh.pop %v1341
    %v1343 = vmul.f32 %v1342, 0.5
    %v1344 = vadd.f32 %v1343, 0.5
    %v1345 = vsel %vm46, %v1342, %v1344
    %v1346 = vmul.f32 %v1345, %v1257
    %1348 = vrot.lane.b32.xlu0 %v1345, 64
    %v1349 = vpop.permute.xlu0 %1348
    %v1351 = vmul.f32 %v1345, %v1349
    %1353 = vrot.lane.b32.xlu0 %v1351, 32
    %v1354 = vpop.permute.xlu0 %1353
    %v1356 = vadd.f32 %v1346, %v1354
    %v1357 = vtanh.pop %v1356
    %1359 = vrot.lane.b32.xlu0 %v1357, 64
    %v1360 = vpop.permute.xlu0 %1359
    %v1362 = vmul.f32 %v1345, %v1360
    %1364 = vrot.lane.b32.xlu0 %v1362, 32
    %v1365 = vpop.permute.xlu0 %1364
    %v1366 = vsel %vm202, %v1365, 0
    %1368 = vmatprep.subr.mxu0 0.0
    %1369 = vmatpush1.msra.mxu0 0.0
    %1370 = vmatprep.subr.mxu0 0.0
    %1371 = vmatpush1.msra.mxu0 0.0
    %1372 = vmatprep.subr.mxu0 0.0
    %1373 = vmatpush1.msra.mxu0 0.0
    %1374 = vmatprep.subr.mxu0 0.0
    %1375 = vmatpush1.msra.mxu0 0.0
    %1376 = vmatprep.subr.mxu0 0.0
    %1377 = vmatpush1.msra.mxu0 0.0
    %1378 = vmatprep.subr.mxu0 0.0
    %1379 = vmatpush1.msra.mxu0 0.0
    %1380 = vmatprep.subr.mxu0 0.0
    %1381 = vmatpush1.msra.mxu0 0.0
    %1382 = vmatprep.subr.mxu0 0.0
    %1383 = vmatpush1.msra.mxu0 0.0
    %1384 = vmatprep.subr.mxu0 0.0
    %1385 = vmatpush1.msra.mxu0 0.0
    %1386 = vmatprep.subr.mxu0 0.0
    %1387 = vmatpush1.msra.mxu0 0.0
    %1388 = vmatprep.subr.mxu0 0.0
    %1389 = vmatpush1.msra.mxu0 0.0
    %1390 = vmatprep.subr.mxu0 0.0
    %1391 = vmatpush1.msra.mxu0 0.0
    %1392 = vmatprep.subr.mxu0 0.0
    %1393 = vmatpush1.msra.mxu0 %v1033
    %1394 = vmatprep.subr.mxu0 0.0
    %1395 = vmatpush1.msra.mxu0 %v1032
    %1396 = vmatprep.subr.mxu0 0.0
    %1397 = vmatpush1.msra.mxu0 %v1031
    %1398 = vmatprep.subr.mxu0 0.0
    %1399 = vmatpush1.msra.mxu0 %v1030
    %1400 = vmatprep.subr.mxu0 0.0
    %1401 = vmatpush2.msra.mxu0 0.0
    %1402 = vmatprep.subr.mxu0 0.0
    %1403 = vmatpush2.msra.mxu0 0.0
    %1404 = vmatprep.subr.mxu0 0.0
    %1405 = vmatpush2.msra.mxu0 0.0
    %1406 = vmatprep.subr.mxu0 0.0
    %1407 = vmatpush2.msra.mxu0 0.0
    %1408 = vmatprep.subr.mxu0 0.0
    %1409 = vmatpush2.msra.mxu0 0.0
    %1410 = vmatprep.subr.mxu0 0.0
    %1411 = vmatpush2.msra.mxu0 0.0
    %1412 = vmatprep.subr.mxu0 0.0
    %1413 = vmatpush2.msra.mxu0 0.0
    %1414 = vmatprep.subr.mxu0 0.0
    %1415 = vmatpush2.msra.mxu0 0.0
    %1416 = vmatprep.subr.mxu0 0.0
    %1417 = vmatpush2.msra.mxu0 0.0
    %1418 = vmatprep.subr.mxu0 0.0
    %1419 = vmatpush2.msra.mxu0 0.0
    %1420 = vmatprep.subr.mxu0 0.0
    %1421 = vmatpush2.msra.mxu0 0.0
    %1422 = vmatprep.subr.mxu0 0.0
    %1423 = vmatpush2.msra.mxu0 0.0
    %1424 = vmatprep.subr.mxu0 0.0
    %1425 = vmatpush2.msra.mxu0 0.0
    %1426 = vmatprep.subr.mxu0 0.0
    %1427 = vmatpush2.msra.mxu0 0.0
    %1428 = vmatprep.subr.mxu0 0.0
    %1429 = vmatpush2.msra.mxu0 0.0
    %1430 = vmatprep.subr.mxu0 0.0
    %1431 = vmatpush2.msra.mxu0 0.0
    %1432 = vmatprep.mubr.f32.mxu0 0.0
    %1433 = vmatmul.mubr.f32.gmra.mxu0 %v1366
    %v1434 = vpop.f32.mrf.mxu0
    %v1435 = vadd.f32 0.0, %v1434
    %v1436 = vpop.f32.mrf.mxu0
    %1437 = vdwg.mxu0
    %v1438 = vadd.f32 %v1142, %v1435
    %v1439 = vmul.f32 %v1438, 0.5
    %v1440 = vsel %vm46, %v1438, %v1439
    %v1441 = vtanh.pop %v1440
    %v1442 = vmul.f32 %v1441, 0.5
    %v1443 = vadd.f32 %v1442, 0.5
    %v1444 = vsel %vm46, %v1441, %v1443
    %v1445 = vmul.f32 %v1444, %v1356
    %1447 = vrot.lane.b32.xlu0 %v1444, 64
    %v1448 = vpop.permute.xlu0 %1447
    %v1450 = vmul.f32 %v1444, %v1448
    %1452 = vrot.lane.b32.xlu0 %v1450, 32
    %v1453 = vpop.permute.xlu0 %1452
    %v1455 = vadd.f32 %v1445, %v1453
    %v1456 = vtanh.pop %v1455
    %1458 = vrot.lane.b32.xlu0 %v1456, 64
    %v1459 = vpop.permute.xlu0 %1458
    %v1461 = vmul.f32 %v1444, %v1459
    %1463 = vrot.lane.b32.xlu0 %v1461, 32
    %v1464 = vpop.permute.xlu0 %1463
    %v1465 = vsel %vm202, %v1464, 0
    %1467 = vmatprep.subr.mxu0 0.0
    %1468 = vmatpush1.msra.mxu0 0.0
    %1469 = vmatprep.subr.mxu0 0.0
    %1470 = vmatpush1.msra.mxu0 0.0
    %1471 = vmatprep.subr.mxu0 0.0
    %1472 = vmatpush1.msra.mxu0 0.0
    %1473 = vmatprep.subr.mxu0 0.0
    %1474 = vmatpush1.msra.mxu0 0.0
    %1475 = vmatprep.subr.mxu0 0.0
    %1476 = vmatpush1.msra.mxu0 0.0
    %1477 = vmatprep.subr.mxu0 0.0
    %1478 = vmatpush1.msra.mxu0 0.0
    %1479 = vmatprep.subr.mxu0 0.0
    %1480 = vmatpush1.msra.mxu0 0.0
    %1481 = vmatprep.subr.mxu0 0.0
    %1482 = vmatpush1.msra.mxu0 0.0
    %1483 = vmatprep.subr.mxu0 0.0
    %1484 = vmatpush1.msra.mxu0 0.0
    %1485 = vmatprep.subr.mxu0 0.0
    %1486 = vmatpush1.msra.mxu0 0.0
    %1487 = vmatprep.subr.mxu0 0.0
    %1488 = vmatpush1.msra.mxu0 0.0
    %1489 = vmatprep.subr.mxu0 0.0
    %1490 = vmatpush1.msra.mxu0 0.0
    %1491 = vmatprep.subr.mxu0 0.0
    %1492 = vmatpush1.msra.mxu0 %v1033
    %1493 = vmatprep.subr.mxu0 0.0
    %1494 = vmatpush1.msra.mxu0 %v1032
    %1495 = vmatprep.subr.mxu0 0.0
    %1496 = vmatpush1.msra.mxu0 %v1031
    %1497 = vmatprep.subr.mxu0 0.0
    %1498 = vmatpush1.msra.mxu0 %v1030
    %1499 = vmatprep.subr.mxu0 0.0
    %1500 = vmatpush2.msra.mxu0 0.0
    %1501 = vmatprep.subr.mxu0 0.0
    %1502 = vmatpush2.msra.mxu0 0.0
    %1503 = vmatprep.subr.mxu0 0.0
    %1504 = vmatpush2.msra.mxu0 0.0
    %1505 = vmatprep.subr.mxu0 0.0
    %1506 = vmatpush2.msra.mxu0 0.0
    %1507 = vmatprep.subr.mxu0 0.0
    %1508 = vmatpush2.msra.mxu0 0.0
    %1509 = vmatprep.subr.mxu0 0.0
    %1510 = vmatpush2.msra.mxu0 0.0
    %1511 = vmatprep.subr.mxu0 0.0
    %1512 = vmatpush2.msra.mxu0 0.0
    %1513 = vmatprep.subr.mxu0 0.0
    %1514 = vmatpush2.msra.mxu0 0.0
    %1515 = vmatprep.subr.mxu0 0.0
    %1516 = vmatpush2.msra.mxu0 0.0
    %1517 = vmatprep.subr.mxu0 0.0
    %1518 = vmatpush2.msra.mxu0 0.0
    %1519 = vmatprep.subr.mxu0 0.0
    %1520 = vmatpush2.msra.mxu0 0.0
    %1521 = vmatprep.subr.mxu0 0.0
    %1522 = vmatpush2.msra.mxu0 0.0
    %1523 = vmatprep.subr.mxu0 0.0
    %1524 = vmatpush2.msra.mxu0 0.0
    %1525 = vmatprep.subr.mxu0 0.0
    %1526 = vmatpush2.msra.mxu0 0.0
    %1527 = vmatprep.subr.mxu0 0.0
    %1528 = vmatpush2.msra.mxu0 0.0
    %1529 = vmatprep.subr.mxu0 0.0
    %1530 = vmatpush2.msra.mxu0 0.0
    %1531 = vmatprep.mubr.f32.mxu0 0.0
    %1532 = vmatmul.mubr.f32.gmra.mxu0 %v1465
    %v1533 = vpop.f32.mrf.mxu0
    %v1534 = vadd.f32 0.0, %v1533
    %v1535 = vpop.f32.mrf.mxu0
    %1536 = vdwg.mxu0
    %v1537 = vadd.f32 %v1147, %v1534
    %v1538 = vmul.f32 %v1537, 0.5
    %v1539 = vsel %vm46, %v1537, %v1538
    %v1540 = vtanh.pop %v1539
    %v1541 = vmul.f32 %v1540, 0.5
    %v1542 = vadd.f32 %v1541, 0.5
    %v1543 = vsel %vm46, %v1540, %v1542
    %v1544 = vmul.f32 %v1543, %v1455
    %1546 = vrot.lane.b32.xlu0 %v1543, 64
    %v1547 = vpop.permute.xlu0 %1546
    %v1549 = vmul.f32 %v1543, %v1547
    %1551 = vrot.lane.b32.xlu0 %v1549, 32
    %v1552 = vpop.permute.xlu0 %1551
    %v1554 = vadd.f32 %v1544, %v1552
    %v1555 = vtanh.pop %v1554
    %1557 = vrot.lane.b32.xlu0 %v1555, 64
    %v1558 = vpop.permute.xlu0 %1557
    %v1560 = vmul.f32 %v1543, %v1558
    %1562 = vrot.lane.b32.xlu0 %v1560, 32
    %v1563 = vpop.permute.xlu0 %1562
    %v1564 = vsel %vm202, %v1563, 0
    %1566 = vmatprep.subr.mxu0 0.0
    %1567 = vmatpush1.msra.mxu0 0.0
    %1568 = vmatprep.subr.mxu0 0.0
    %1569 = vmatpush1.msra.mxu0 0.0
    %1570 = vmatprep.subr.mxu0 0.0
    %1571 = vmatpush1.msra.mxu0 0.0
    %1572 = vmatprep.subr.mxu0 0.0
    %1573 = vmatpush1.msra.mxu0 0.0
    %1574 = vmatprep.subr.mxu0 0.0
    %1575 = vmatpush1.msra.mxu0 0.0
    %1576 = vmatprep.subr.mxu0 0.0
    %1577 = vmatpush1.msra.mxu0 0.0
    %1578 = vmatprep.subr.mxu0 0.0
    %1579 = vmatpush1.msra.mxu0 0.0
    %1580 = vmatprep.subr.mxu0 0.0
    %1581 = vmatpush1.msra.mxu0 0.0
    %1582 = vmatprep.subr.mxu0 0.0
    %1583 = vmatpush1.msra.mxu0 0.0
    %1584 = vmatprep.subr.mxu0 0.0
    %1585 = vmatpush1.msra.mxu0 0.0
    %1586 = vmatprep.subr.mxu0 0.0
    %1587 = vmatpush1.msra.mxu0 0.0
    %1588 = vmatprep.subr.mxu0 0.0
    %1589 = vmatpush1.msra.mxu0 0.0
    %1590 = vmatprep.subr.mxu0 0.0
    %1591 = vmatpush1.msra.mxu0 %v1033
    %1592 = vmatprep.subr.mxu0 0.0
    %1593 = vmatpush1.msra.mxu0 %v1032
    %1594 = vmatprep.subr.mxu0 0.0
    %1595 = vmatpush1.msra.mxu0 %v1031
    %1596 = vmatprep.subr.mxu0 0.0
    %1597 = vmatpush1.msra.mxu0 %v1030
    %1598 = vmatprep.subr.mxu0 0.0
    %1599 = vmatpush2.msra.mxu0 0.0
    %1600 = vmatprep.subr.mxu0 0.0
    %1601 = vmatpush2.msra.mxu0 0.0
    %1602 = vmatprep.subr.mxu0 0.0
    %1603 = vmatpush2.msra.mxu0 0.0
    %1604 = vmatprep.subr.mxu0 0.0
    %1605 = vmatpush2.msra.mxu0 0.0
    %1606 = vmatprep.subr.mxu0 0.0
    %1607 = vmatpush2.msra.mxu0 0.0
    %1608 = vmatprep.subr.mxu0 0.0
    %1609 = vmatpush2.msra.mxu0 0.0
    %1610 = vmatprep.subr.mxu0 0.0
    %1611 = vmatpush2.msra.mxu0 0.0
    %1612 = vmatprep.subr.mxu0 0.0
    %1613 = vmatpush2.msra.mxu0 0.0
    %1614 = vmatprep.subr.mxu0 0.0
    %1615 = vmatpush2.msra.mxu0 0.0
    %1616 = vmatprep.subr.mxu0 0.0
    %1617 = vmatpush2.msra.mxu0 0.0
    %1618 = vmatprep.subr.mxu0 0.0
    %1619 = vmatpush2.msra.mxu0 0.0
    %1620 = vmatprep.subr.mxu0 0.0
    %1621 = vmatpush2.msra.mxu0 0.0
    %1622 = vmatprep.subr.mxu0 0.0
    %1623 = vmatpush2.msra.mxu0 0.0
    %1624 = vmatprep.subr.mxu0 0.0
    %1625 = vmatpush2.msra.mxu0 0.0
    %1626 = vmatprep.subr.mxu0 0.0
    %1627 = vmatpush2.msra.mxu0 0.0
    %1628 = vmatprep.subr.mxu0 0.0
    %1629 = vmatpush2.msra.mxu0 0.0
    %1630 = vmatprep.mubr.f32.mxu0 0.0
    %1631 = vmatmul.mubr.f32.gmra.mxu0 %v1564
    %v1632 = vpop.f32.mrf.mxu0
    %v1633 = vadd.f32 0.0, %v1632
    %v1634 = vpop.f32.mrf.mxu0
    %1635 = vdwg.mxu0
    %v1636 = vadd.f32 %v1152, %v1633
    %v1637 = vmul.f32 %v1636, 0.5
    %v1638 = vsel %vm46, %v1636, %v1637
    %v1639 = vtanh.pop %v1638
    %v1640 = vmul.f32 %v1639, 0.5
    %v1641 = vadd.f32 %v1640, 0.5
    %v1642 = vsel %vm46, %v1639, %v1641
    %v1643 = vmul.f32 %v1642, %v1554
    %1645 = vrot.lane.b32.xlu0 %v1642, 64
    %v1646 = vpop.permute.xlu0 %1645
    %v1648 = vmul.f32 %v1642, %v1646
    %1650 = vrot.lane.b32.xlu0 %v1648, 32
    %v1651 = vpop.permute.xlu0 %1650
    %v1653 = vadd.f32 %v1643, %v1651
    %v1654 = vtanh.pop %v1653
    %1656 = vrot.lane.b32.xlu0 %v1654, 64
    %v1657 = vpop.permute.xlu0 %1656
    %v1659 = vmul.f32 %v1642, %v1657
    %1661 = vrot.lane.b32.xlu0 %v1659, 32
    %v1662 = vpop.permute.xlu0 %1661
    %v1663 = vsel %vm202, %v1662, 0
    %1665 = vmatprep.subr.mxu0 0.0
    %1666 = vmatpush1.msra.mxu0 0.0
    %1667 = vmatprep.subr.mxu0 0.0
    %1668 = vmatpush1.msra.mxu0 0.0
    %1669 = vmatprep.subr.mxu0 0.0
    %1670 = vmatpush1.msra.mxu0 0.0
    %1671 = vmatprep.subr.mxu0 0.0
    %1672 = vmatpush1.msra.mxu0 0.0
    %1673 = vmatprep.subr.mxu0 0.0
    %1674 = vmatpush1.msra.mxu0 0.0
    %1675 = vmatprep.subr.mxu0 0.0
    %1676 = vmatpush1.msra.mxu0 0.0
    %1677 = vmatprep.subr.mxu0 0.0
    %1678 = vmatpush1.msra.mxu0 0.0
    %1679 = vmatprep.subr.mxu0 0.0
    %1680 = vmatpush1.msra.mxu0 0.0
    %1681 = vmatprep.subr.mxu0 0.0
    %1682 = vmatpush1.msra.mxu0 0.0
    %1683 = vmatprep.subr.mxu0 0.0
    %1684 = vmatpush1.msra.mxu0 0.0
    %1685 = vmatprep.subr.mxu0 0.0
    %1686 = vmatpush1.msra.mxu0 0.0
    %1687 = vmatprep.subr.mxu0 0.0
    %1688 = vmatpush1.msra.mxu0 0.0
    %1689 = vmatprep.subr.mxu0 0.0
    %1690 = vmatpush1.msra.mxu0 %v1033
    %1691 = vmatprep.subr.mxu0 0.0
    %1692 = vmatpush1.msra.mxu0 %v1032
    %1693 = vmatprep.subr.mxu0 0.0
    %1694 = vmatpush1.msra.mxu0 %v1031
    %1695 = vmatprep.subr.mxu0 0.0
    %1696 = vmatpush1.msra.mxu0 %v1030
    %1697 = vmatprep.subr.mxu0 0.0
    %1698 = vmatpush2.msra.mxu0 0.0
    %1699 = vmatprep.subr.mxu0 0.0
    %1700 = vmatpush2.msra.mxu0 0.0
    %1701 = vmatprep.subr.mxu0 0.0
    %1702 = vmatpush2.msra.mxu0 0.0
    %1703 = vmatprep.subr.mxu0 0.0
    %1704 = vmatpush2.msra.mxu0 0.0
    %1705 = vmatprep.subr.mxu0 0.0
    %1706 = vmatpush2.msra.mxu0 0.0
    %1707 = vmatprep.subr.mxu0 0.0
    %1708 = vmatpush2.msra.mxu0 0.0
    %1709 = vmatprep.subr.mxu0 0.0
    %1710 = vmatpush2.msra.mxu0 0.0
    %1711 = vmatprep.subr.mxu0 0.0
    %1712 = vmatpush2.msra.mxu0 0.0
    %1713 = vmatprep.subr.mxu0 0.0
    %1714 = vmatpush2.msra.mxu0 0.0
    %1715 = vmatprep.subr.mxu0 0.0
    %1716 = vmatpush2.msra.mxu0 0.0
    %1717 = vmatprep.subr.mxu0 0.0
    %1718 = vmatpush2.msra.mxu0 0.0
    %1719 = vmatprep.subr.mxu0 0.0
    %1720 = vmatpush2.msra.mxu0 0.0
    %1721 = vmatprep.subr.mxu0 0.0
    %1722 = vmatpush2.msra.mxu0 0.0
    %1723 = vmatprep.subr.mxu0 0.0
    %1724 = vmatpush2.msra.mxu0 0.0
    %1725 = vmatprep.subr.mxu0 0.0
    %1726 = vmatpush2.msra.mxu0 0.0
    %1727 = vmatprep.subr.mxu0 0.0
    %1728 = vmatpush2.msra.mxu0 0.0
    %1729 = vmatprep.mubr.f32.mxu0 0.0
    %1730 = vmatmul.mubr.f32.gmra.mxu0 %v1663
    %v1731 = vpop.f32.mrf.mxu0
    %v1732 = vadd.f32 0.0, %v1731
    %v1733 = vpop.f32.mrf.mxu0
    %1734 = vdwg.mxu0
    %v1735 = vadd.f32 %v1157, %v1732
    %v1736 = vmul.f32 %v1735, 0.5
    %v1737 = vsel %vm46, %v1735, %v1736
    %v1738 = vtanh.pop %v1737
    %v1739 = vmul.f32 %v1738, 0.5
    %v1740 = vadd.f32 %v1739, 0.5
    %v1741 = vsel %vm46, %v1738, %v1740
    %v1742 = vmul.f32 %v1741, %v1653
    %1744 = vrot.lane.b32.xlu0 %v1741, 64
    %v1745 = vpop.permute.xlu0 %1744
    %v1747 = vmul.f32 %v1741, %v1745
    %1749 = vrot.lane.b32.xlu0 %v1747, 32
    %v1750 = vpop.permute.xlu0 %1749
    %v1752 = vadd.f32 %v1742, %v1750
    %v1753 = vtanh.pop %v1752
    %1755 = vrot.lane.b32.xlu0 %v1753, 64
    %v1756 = vpop.permute.xlu0 %1755
    %v1758 = vmul.f32 %v1741, %v1756
    %1760 = vrot.lane.b32.xlu0 %v1758, 32
    %v1761 = vpop.permute.xlu0 %1760
    %v1762 = vsel %vm202, %v1761, 0
    %1764 = vmatprep.subr.mxu0 0.0
    %1765 = vmatpush1.msra.mxu0 0.0
    %1766 = vmatprep.subr.mxu0 0.0
    %1767 = vmatpush1.msra.mxu0 0.0
    %1768 = vmatprep.subr.mxu0 0.0
    %1769 = vmatpush1.msra.mxu0 0.0
    %1770 = vmatprep.subr.mxu0 0.0
    %1771 = vmatpush1.msra.mxu0 0.0
    %1772 = vmatprep.subr.mxu0 0.0
    %1773 = vmatpush1.msra.mxu0 0.0
    %1774 = vmatprep.subr.mxu0 0.0
    %1775 = vmatpush1.msra.mxu0 0.0
    %1776 = vmatprep.subr.mxu0 0.0
    %1777 = vmatpush1.msra.mxu0 0.0
    %1778 = vmatprep.subr.mxu0 0.0
    %1779 = vmatpush1.msra.mxu0 0.0
    %1780 = vmatprep.subr.mxu0 0.0
    %1781 = vmatpush1.msra.mxu0 0.0
    %1782 = vmatprep.subr.mxu0 0.0
    %1783 = vmatpush1.msra.mxu0 0.0
    %1784 = vmatprep.subr.mxu0 0.0
    %1785 = vmatpush1.msra.mxu0 0.0
    %1786 = vmatprep.subr.mxu0 0.0
    %1787 = vmatpush1.msra.mxu0 0.0
    %1788 = vmatprep.subr.mxu0 0.0
    %1789 = vmatpush1.msra.mxu0 %v1033
    %1790 = vmatprep.subr.mxu0 0.0
    %1791 = vmatpush1.msra.mxu0 %v1032
    %1792 = vmatprep.subr.mxu0 0.0
    %1793 = vmatpush1.msra.mxu0 %v1031
    %1794 = vmatprep.subr.mxu0 0.0
    %1795 = vmatpush1.msra.mxu0 %v1030
    %1796 = vmatprep.subr.mxu0 0.0
    %1797 = vmatpush2.msra.mxu0 0.0
    %1798 = vmatprep.subr.mxu0 0.0
    %1799 = vmatpush2.msra.mxu0 0.0
    %1800 = vmatprep.subr.mxu0 0.0
    %1801 = vmatpush2.msra.mxu0 0.0
    %1802 = vmatprep.subr.mxu0 0.0
    %1803 = vmatpush2.msra.mxu0 0.0
    %1804 = vmatprep.subr.mxu0 0.0
    %1805 = vmatpush2.msra.mxu0 0.0
    %1806 = vmatprep.subr.mxu0 0.0
    %1807 = vmatpush2.msra.mxu0 0.0
    %1808 = vmatprep.subr.mxu0 0.0
    %1809 = vmatpush2.msra.mxu0 0.0
    %1810 = vmatprep.subr.mxu0 0.0
    %1811 = vmatpush2.msra.mxu0 0.0
    %1812 = vmatprep.subr.mxu0 0.0
    %1813 = vmatpush2.msra.mxu0 0.0
    %1814 = vmatprep.subr.mxu0 0.0
    %1815 = vmatpush2.msra.mxu0 0.0
    %1816 = vmatprep.subr.mxu0 0.0
    %1817 = vmatpush2.msra.mxu0 0.0
    %1818 = vmatprep.subr.mxu0 0.0
    %1819 = vmatpush2.msra.mxu0 0.0
    %1820 = vmatprep.subr.mxu0 0.0
    %1821 = vmatpush2.msra.mxu0 0.0
    %1822 = vmatprep.subr.mxu0 0.0
    %1823 = vmatpush2.msra.mxu0 0.0
    %1824 = vmatprep.subr.mxu0 0.0
    %1825 = vmatpush2.msra.mxu0 0.0
    %1826 = vmatprep.subr.mxu0 0.0
    %1827 = vmatpush2.msra.mxu0 0.0
    %1828 = vmatprep.mubr.f32.mxu0 0.0
    %1829 = vmatmul.mubr.f32.gmra.mxu0 %v1762
    %v1830 = vpop.f32.mrf.mxu0
    %v1831 = vadd.f32 0.0, %v1830
    %v1832 = vpop.f32.mrf.mxu0
    %1833 = vdwg.mxu0
    %v1834 = vadd.f32 %v1162, %v1831
    %v1835 = vmul.f32 %v1834, 0.5
    %v1836 = vsel %vm46, %v1834, %v1835
    %v1837 = vtanh.pop %v1836
    %v1838 = vmul.f32 %v1837, 0.5
    %v1839 = vadd.f32 %v1838, 0.5
    %v1840 = vsel %vm46, %v1837, %v1839
    %v1841 = vmul.f32 %v1840, %v1752
    %1843 = vrot.lane.b32.xlu0 %v1840, 64
    %v1844 = vpop.permute.xlu0 %1843
    %v1846 = vmul.f32 %v1840, %v1844
    %1848 = vrot.lane.b32.xlu0 %v1846, 32
    %v1849 = vpop.permute.xlu0 %1848
    %v1851 = vadd.f32 %v1841, %v1849
    %v1852 = vtanh.pop %v1851
    %1854 = vrot.lane.b32.xlu0 %v1852, 64
    %v1855 = vpop.permute.xlu0 %1854
    %v1857 = vmul.f32 %v1840, %v1855
    %1859 = vrot.lane.b32.xlu0 %v1857, 32
    %v1860 = vpop.permute.xlu0 %1859
    %v1861 = vsel %vm202, %v1860, 0
    %1863 = vmatprep.subr.mxu0 0.0
    %1864 = vmatpush1.msra.mxu0 0.0
    %1865 = vmatprep.subr.mxu0 0.0
    %1866 = vmatpush1.msra.mxu0 0.0
    %1867 = vmatprep.subr.mxu0 0.0
    %1868 = vmatpush1.msra.mxu0 0.0
    %1869 = vmatprep.subr.mxu0 0.0
    %1870 = vmatpush1.msra.mxu0 0.0
    %1871 = vmatprep.subr.mxu0 0.0
    %1872 = vmatpush1.msra.mxu0 0.0
    %1873 = vmatprep.subr.mxu0 0.0
    %1874 = vmatpush1.msra.mxu0 0.0
    %1875 = vmatprep.subr.mxu0 0.0
    %1876 = vmatpush1.msra.mxu0 0.0
    %1877 = vmatprep.subr.mxu0 0.0
    %1878 = vmatpush1.msra.mxu0 0.0
    %1879 = vmatprep.subr.mxu0 0.0
    %1880 = vmatpush1.msra.mxu0 0.0
    %1881 = vmatprep.subr.mxu0 0.0
    %1882 = vmatpush1.msra.mxu0 0.0
    %1883 = vmatprep.subr.mxu0 0.0
    %1884 = vmatpush1.msra.mxu0 0.0
    %1885 = vmatprep.subr.mxu0 0.0
    %1886 = vmatpush1.msra.mxu0 0.0
    %1887 = vmatprep.subr.mxu0 0.0
    %1888 = vmatpush1.msra.mxu0 %v1033
    %1889 = vmatprep.subr.mxu0 0.0
    %1890 = vmatpush1.msra.mxu0 %v1032
    %1891 = vmatprep.subr.mxu0 0.0
    %1892 = vmatpush1.msra.mxu0 %v1031
    %1893 = vmatprep.subr.mxu0 0.0
    %1894 = vmatpush1.msra.mxu0 %v1030
    %1895 = vmatprep.subr.mxu0 0.0
    %1896 = vmatpush2.msra.mxu0 0.0
    %1897 = vmatprep.subr.mxu0 0.0
    %1898 = vmatpush2.msra.mxu0 0.0
    %1899 = vmatprep.subr.mxu0 0.0
    %1900 = vmatpush2.msra.mxu0 0.0
    %1901 = vmatprep.subr.mxu0 0.0
    %1902 = vmatpush2.msra.mxu0 0.0
    %1903 = vmatprep.subr.mxu0 0.0
    %1904 = vmatpush2.msra.mxu0 0.0
    %1905 = vmatprep.subr.mxu0 0.0
    %1906 = vmatpush2.msra.mxu0 0.0
    %1907 = vmatprep.subr.mxu0 0.0
    %1908 = vmatpush2.msra.mxu0 0.0
    %1909 = vmatprep.subr.mxu0 0.0
    %1910 = vmatpush2.msra.mxu0 0.0
    %1911 = vmatprep.subr.mxu0 0.0
    %1912 = vmatpush2.msra.mxu0 0.0
    %1913 = vmatprep.subr.mxu0 0.0
    %1914 = vmatpush2.msra.mxu0 0.0
    %1915 = vmatprep.subr.mxu0 0.0
    %1916 = vmatpush2.msra.mxu0 0.0
    %1917 = vmatprep.subr.mxu0 0.0
    %1918 = vmatpush2.msra.mxu0 0.0
    %1919 = vmatprep.subr.mxu0 0.0
    %1920 = vmatpush2.msra.mxu0 0.0
    %1921 = vmatprep.subr.mxu0 0.0
    %1922 = vmatpush2.msra.mxu0 0.0
    %1923 = vmatprep.subr.mxu0 0.0
    %1924 = vmatpush2.msra.mxu0 0.0
    %1925 = vmatprep.subr.mxu0 0.0
    %1926 = vmatpush2.msra.mxu0 0.0
    %1927 = vmatprep.mubr.f32.mxu0 0.0
    %1928 = vmatmul.mubr.f32.gmra.mxu0 %v1861
    %v1929 = vpop.f32.mrf.mxu0
    %v1930 = vadd.f32 0.0, %v1929
    %v1931 = vpop.f32.mrf.mxu0
    %1932 = vdwg.mxu0
    %v1933 = vadd.f32 %v1167, %v1930
    %v1934 = vmul.f32 %v1933, 0.5
    %v1935 = vsel %vm46, %v1933, %v1934
    %v1936 = vtanh.pop %v1935
    %v1937 = vmul.f32 %v1936, 0.5
    %v1938 = vadd.f32 %v1937, 0.5
    %v1939 = vsel %vm46, %v1936, %v1938
    %v1940 = vmul.f32 %v1939, %v1851
    %1942 = vrot.lane.b32.xlu0 %v1939, 64
    %v1943 = vpop.permute.xlu0 %1942
    %v1945 = vmul.f32 %v1939, %v1943
    %1947 = vrot.lane.b32.xlu0 %v1945, 32
    %v1948 = vpop.permute.xlu0 %1947
    %v1950 = vadd.f32 %v1940, %v1948
    %v1951 = vtanh.pop %v1950
    %1953 = vrot.lane.b32.xlu0 %v1951, 64
    %v1954 = vpop.permute.xlu0 %1953
    %v1956 = vmul.f32 %v1939, %v1954
    %1958 = vrot.lane.b32.xlu0 %v1956, 32
    %v1959 = vpop.permute.xlu0 %1958
    %s1961 = scalar_lea.vmem %s7, 8
    %1962 = vst.msk [vmem:[%s1961] sm:$0xff] %vm202, %v1959
    %1964 = vrot.lane.b32.xlu0 %v1950, 96
    %v1965 = vpop.permute.xlu0 %1964
    %s1967 = scalar_lea.vmem %s8, 8
    %1968 = vst.msk [vmem:[%s1967] sm:$0xff] %vm202, %v1965
    // Predicated region
    $region34: #{encoder_forward.1} parent=1 // pred_check
      _
    $region35: #{encoder_forward.1} parent=1 // pred_check_branch
      %1970 = sbr.rel (0) target = $region37
    $region36: #{encoder_forward.1} parent=1 // pred_region
      _
    $region37: #{encoder_forward.1} parent=1 // pred_fallthru
      _
    // Predicated region
    $region38: #{encoder_forward.1} parent=1 // pred_check
      _
    $region39: #{encoder_forward.1} parent=1 // pred_check_branch
      %1972 = sbr.rel (0) target = $region41
    $region40: #{encoder_forward.1} parent=1 // pred_region
      _
    $region41: #{encoder_forward.1} parent=1 // pred_fallthru
      _
    // Predicated region
    $region42: #{encoder_forward.1} parent=1 // pred_check
      _
    $region43: #{encoder_forward.1} parent=1 // pred_check_branch
      %1974 = sbr.rel (0) target = $region45
    $region44: #{encoder_forward.1} parent=1 // pred_region
      _
    $region45: #{encoder_forward.1} parent=1 // pred_fallthru
      _
    // Predicated region
    $region46: #{encoder_forward.1} parent=1 // pred_check
      _
    $region47: #{encoder_forward.1} parent=1 // pred_check_branch
      %1976 = sbr.rel (0) target = $region49
    $region48: #{encoder_forward.1} parent=1 // pred_region
      _
    $region49: #{encoder_forward.1} parent=1 // pred_fallthru
      _
    %1977 = vsyncpa [#allocation4], 1

</llo_original>
